<compile_context>
chip_gen: v5e
topology: v5e:2x2
jax: 0.10.0
libtpu: 0.0.40
codegen_flags: <defaults>
</compile_context>

<pallas_src>
import jax
import jax.numpy as jnp
from jax.experimental import pallas as pl
from jax.experimental.pallas import tpu as pltpu


_LANE = 128
_MAX_ROW_TILE = 512      # output-row tile (G rows in phase A, U rows in phase B)
_MAX_RED_TILE = 512      # reduction tile  (U in phase A, G in phase B)
_VMEM_LIMIT = 48 * 1024 * 1024   # fits v7x (64 MiB) with headroom; fine on v5e/v6e


def _round_up(x, m):
    return ((x + m - 1) // m) * m


def _pad_and_tile(n, max_tile):
    """Pad n to a lane-friendly size and pick a tile that divides it."""
    p = _round_up(n, _LANE)
    if p <= max_tile:
        return p, p
    return _round_up(p, max_tile), max_tile


def _pad2(x, rows, cols):
    r, c = x.shape
    if r == rows and c == cols:
        return x
    return jnp.pad(x, ((0, rows - r), (0, cols - c)))


# ---------------------------------------------------------------------------
# Phase A: msg = Linear(cat([H @ user, (H @ user) * group])) ; final_edge += msg
# ---------------------------------------------------------------------------
def _msg_kernel(h_ref, user_ref, group_ref, edge_ref, w1_ref, w2_ref, b_ref,
                msg_ref, edge_out_ref, acc_ref):
    k = pl.program_id(1)

    @pl.when(k == 0)
    def _():
        acc_ref[...] = jnp.zeros_like(acc_ref)

    # node_msg partial sum: H tile (bf16, exact 0/1) upcast, f32 accumulation.
    acc_ref[...] += jnp.dot(h_ref[...].astype(jnp.float32), user_ref[...],
                            preferred_element_type=jnp.float32)

    @pl.when(k == pl.num_programs(1) - 1)
    def _():
        node_msg = acc_ref[...]                                  # (tg, Dp)
        en = node_msg * group_ref[...]                           # (tg, Dp)
        msg = (jnp.dot(node_msg, w1_ref[...], preferred_element_type=jnp.float32)
               + jnp.dot(en, w2_ref[...], preferred_element_type=jnp.float32)
               + b_ref[...])                                     # (tg, Dp)
        msg_ref[...] = msg.astype(msg_ref.dtype)
        edge_out_ref[...] = (edge_ref[...] + msg).astype(edge_out_ref.dtype)


def _msg_phase(h_p, user_p, group_p, edge_p, w1_p, w2_p, b_p, tg, tu):
    Gp, Up = h_p.shape
    Dp = user_p.shape[1]
    grid = (Gp // tg, Up // tu)
    return pl.pallas_call(
        _msg_kernel,
        out_shape=(jax.ShapeDtypeStruct((Gp, Dp), jnp.float32),
                   jax.ShapeDtypeStruct((Gp, Dp), jnp.float32)),
        grid=grid,
        in_specs=[
            pl.BlockSpec((tg, tu), lambda i, k: (i, k)),    # H tile (bf16)
            pl.BlockSpec((tu, Dp), lambda i, k: (k, 0)),    # user tile (reduction)
            pl.BlockSpec((tg, Dp), lambda i, k: (i, 0)),    # group tile (per-row)
            pl.BlockSpec((tg, Dp), lambda i, k: (i, 0)),    # running final_edge
            pl.BlockSpec((Dp, Dp), lambda i, k: (0, 0)),    # W1 resident
            pl.BlockSpec((Dp, Dp), lambda i, k: (0, 0)),    # W2 resident
            pl.BlockSpec((1, Dp), lambda i, k: (0, 0)),     # bias resident
        ],
        out_specs=(pl.BlockSpec((tg, Dp), lambda i, k: (i, 0)),
                   pl.BlockSpec((tg, Dp), lambda i, k: (i, 0))),
        scratch_shapes=[pltpu.VMEM((tg, Dp), jnp.float32)],
        compiler_params=pltpu.CompilerParams(
            dimension_semantics=("parallel", "arbitrary"),
            vmem_limit_bytes=_VMEM_LIMIT),
    )(h_p, user_p, group_p, edge_p, w1_p, w2_p, b_p)


# ---------------------------------------------------------------------------
# Phase B: norm = Ht @ msg ; final_node += norm
# ---------------------------------------------------------------------------
def _norm_kernel(ht_ref, msg_ref, node_ref, norm_ref, node_out_ref, acc_ref):
    k = pl.program_id(1)

    @pl.when(k == 0)
    def _():
        acc_ref[...] = jnp.zeros_like(acc_ref)

    acc_ref[...] += jnp.dot(ht_ref[...].astype(jnp.float32), msg_ref[...],
                            preferred_element_type=jnp.float32)

    @pl.when(k == pl.num_programs(1) - 1)
    def _():
        norm = acc_ref[...]
        norm_ref[...] = norm.astype(norm_ref.dtype)
        node_out_ref[...] = (node_ref[...] + norm).astype(node_out_ref.dtype)


def _norm_phase(ht_p, msg_p, node_p, tu, tg):
    Up, Gp = ht_p.shape
    Dp = msg_p.shape[1]
    grid = (Up // tu, Gp // tg)
    return pl.pallas_call(
        _norm_kernel,
        out_shape=(jax.ShapeDtypeStruct((Up, Dp), jnp.float32),
                   jax.ShapeDtypeStruct((Up, Dp), jnp.float32)),
        grid=grid,
        in_specs=[
            pl.BlockSpec((tu, tg), lambda i, k: (i, k)),    # Ht tile (bf16)
            pl.BlockSpec((tg, Dp), lambda i, k: (k, 0)),    # msg tile (reduction)
            pl.BlockSpec((tu, Dp), lambda i, k: (i, 0)),    # running final_node
        ],
        out_specs=(pl.BlockSpec((tu, Dp), lambda i, k: (i, 0)),
                   pl.BlockSpec((tu, Dp), lambda i, k: (i, 0))),
        scratch_shapes=[pltpu.VMEM((tu, Dp), jnp.float32)],
        compiler_params=pltpu.CompilerParams(
            dimension_semantics=("parallel", "arbitrary"),
            vmem_limit_bytes=_VMEM_LIMIT),
    )(ht_p, msg_p, node_p)


# ---------------------------------------------------------------------------
# Full forward (matches HGCN_GG_PREFER.forward)
# ---------------------------------------------------------------------------
@jax.jit
def hgcn_gg_prefer_forward(h, group_emb, user_emb, wts, bs):
    """Returns (final_node_emb (U, D), final_edge_emb (G, D))."""
    G, U = h.shape
    D = user_emb.shape[1]

    Gp, tg = _pad_and_tile(G, _MAX_ROW_TILE)
    Up, tu = _pad_and_tile(U, _MAX_RED_TILE)
    Dp = _round_up(D, _LANE)

    # H cast to bf16 once (0/1 is exact in bf16); Ht built once, reused every layer.
    h_p = _pad2(h.astype(jnp.float32), Gp, Up).astype(jnp.bfloat16)
    ht_p = h_p.T
    user_p = _pad2(user_emb.astype(jnp.float32), Up, Dp)
    group_p = _pad2(group_emb.astype(jnp.float32), Gp, Dp)

    final_node = user_p
    final_edge = group_p
    # TODO(synk): the strictly-sequential layer loop (outputs swap roles each layer)
    # stays in JAX glue; only the residual sums are fused into the kernels.
    for wt, b in zip(wts, bs):
        w1_p = _pad2(wt[:D, :].astype(jnp.float32), Dp, Dp)
        w2_p = _pad2(wt[D:, :].astype(jnp.float32), Dp, Dp)
        b_p = _pad2(b.astype(jnp.float32).reshape(1, -1), 1, Dp)

        msg_p, final_edge = _msg_phase(h_p, user_p, group_p, final_edge,
                                       w1_p, w2_p, b_p, tg, tu)
        norm_p, final_node = _norm_phase(ht_p, msg_p, final_node, tu, tg)
        user_p, group_p = norm_p, msg_p

    return final_node[:U, :D], final_edge[:G, :D]


def _reference_forward(h, group_emb, user_emb, wts, bs):
    """Pure-JAX reference mirroring the PyTorch module, for verification."""
    final_node = [user_emb]
    final_edge = [group_emb]
    for wt, b in zip(wts, bs):
        node_msg = h @ user_emb
        en = node_msg * group_emb
        msg = jnp.concatenate([node_msg, en], axis=1) @ wt + b
        norm = h.T @ msg
        user_emb, group_emb = norm, msg
        final_node.append(user_emb)
        final_edge.append(group_emb)
    return (jnp.sum(jnp.stack(final_node), axis=0),
            jnp.sum(jnp.stack(final_edge), axis=0))


if __name__ == "__main__":
    key = jax.random.PRNGKey(0)
    G, U, D = 8, 16, 32        # groups (hyperedges), users (nodes), embedding dim
    LAYERS = 2

    k_h, k_u, k_g, *k_params = jax.random.split(key, 3 + 2 * LAYERS)

    # Dense 0/1 hypergraph incidence matrix (stand-in for the torch sparse matrix).
    h = (jax.random.uniform(k_h, (G, U)) < 0.3).astype(jnp.float32)
    user_emb = jax.random.normal(k_u, (U, D), dtype=jnp.float32)
    group_emb = jax.random.normal(k_g, (G, D), dtype=jnp.float32)

    # Deterministic per-layer Linear(2D, D) params (weight stored transposed: Wt (2D, D)).
    wts, bs = [], []
    for li in range(LAYERS):
        w = jax.random.normal(k_params[2 * li], (D, 2 * D), jnp.float32) * 0.05
        b = jax.random.normal(k_params[2 * li + 1], (1, D), jnp.float32) * 0.05
        wts.append(w.T)        # (2D, D)
        bs.append(b)           # (1, D)
    wts = tuple(wts)
    bs = tuple(bs)

    node_out, edge_out = hgcn_gg_prefer_forward(h, group_emb, user_emb, wts, bs)
    jax.block_until_ready((node_out, edge_out))

    ref_node, ref_edge = _reference_forward(h, group_emb, user_emb, wts, bs)
    assert node_out.shape == (U, D) and edge_out.shape == (G, D)
    assert jnp.allclose(node_out, ref_node, atol=1e-4, rtol=1e-4)
    assert jnp.allclose(edge_out, ref_edge, atol=1e-4, rtol=1e-4)

    print("KERNEL_OK")
</pallas_src>

<mosaic_0001>
module attributes {stable_mosaic.version = 11 : i64} {
  func.func @_norm_kernel(%arg0: i32, %arg1: i32, %arg2: memref<128x128xbf16, #tpu.memory_space<vmem>>, %arg3: memref<128x128xf32, #tpu.memory_space<vmem>>, %arg4: memref<128x128xf32, #tpu.memory_space<vmem>>, %arg5: memref<128x128xf32, #tpu.memory_space<vmem>>, %arg6: memref<128x128xf32, #tpu.memory_space<vmem>>, %arg7: memref<128x128xf32, #tpu.memory_space<vmem>>) attributes {dimension_semantics = [#tpu.dimension_semantics<parallel>, #tpu.dimension_semantics<arbitrary>], iteration_bounds = array<i64: 1, 1>, scalar_prefetch = 0 : i64, scratch_operands = 1 : i64, tpu.core_type = #tpu.core_type<tc>, window_params = [{transform_indices = @transform_0, window_bounds = array<i64: 128, 128>}, {transform_indices = @transform_1, window_bounds = array<i64: 128, 128>}, {transform_indices = @transform_2, window_bounds = array<i64: 128, 128>}, {transform_indices = @transform_3, window_bounds = array<i64: 128, 128>}, {transform_indices = @transform_4, window_bounds = array<i64: 128, 128>}]} {
    %c0_i32 = arith.constant 0 : i32
    %0 = arith.cmpi eq, %arg1, %c0_i32 : i32
    %1 = arith.extui %0 : i1 to i32
    %c0_i32_0 = arith.constant 0 : i32
    %2 = arith.cmpi ne, %1, %c0_i32_0 : i32
    scf.if %2 {
      %cst_10 = arith.constant 0.000000e+00 : f32
      %13 = vector.broadcast %cst_10 : f32 to vector<128x128xf32>
      %c0_11 = arith.constant 0 : index
      %c0_12 = arith.constant 0 : index
      %14 = vector.load %arg7[%c0_11, %c0_12] : memref<128x128xf32, #tpu.memory_space<vmem>>, vector<128x128xf32>
      tpu.vector_store %arg7[%c0_11, %c0_12], %13 {strides = array<i32>} : memref<128x128xf32, #tpu.memory_space<vmem>>, vector<128x128xf32>,
    } else {
    }
    %c0 = arith.constant 0 : index
    %c0_1 = arith.constant 0 : index
    %3 = vector.load %arg7[%c0, %c0_1] : memref<128x128xf32, #tpu.memory_space<vmem>>, vector<128x128xf32>
    %c0_2 = arith.constant 0 : index
    %c0_3 = arith.constant 0 : index
    %4 = vector.load %arg2[%c0_2, %c0_3] : memref<128x128xbf16, #tpu.memory_space<vmem>>, vector<128x128xbf16>
    %5 = arith.extf %4 : vector<128x128xbf16> to vector<128x128xf32>
    %c0_4 = arith.constant 0 : index
    %c0_5 = arith.constant 0 : index
    %6 = vector.load %arg3[%c0_4, %c0_5] : memref<128x128xf32, #tpu.memory_space<vmem>>, vector<128x128xf32>
    %cst = arith.constant dense<0.000000e+00> : vector<128x128xf32>
    %7 = tpu.matmul %5, %6, %cst {dimension_numbers = #tpu.dot_dimension_numbers<[1], [0], [0], [1], [0, 0, 1, 1], [], []>} : vector<128x128xf32>, vector<128x128xf32>, vector<128x128xf32> -> vector<128x128xf32>
    %8 = arith.addf %3, %7 : vector<128x128xf32>
    %c0_6 = arith.constant 0 : index
    %c0_7 = arith.constant 0 : index
    %9 = vector.load %arg7[%c0_6, %c0_7] : memref<128x128xf32, #tpu.memory_space<vmem>>, vector<128x128xf32>
    tpu.vector_store %arg7[%c0_6, %c0_7], %8 {strides = array<i32>} : memref<128x128xf32, #tpu.memory_space<vmem>>, vector<128x128xf32>,
    %c0_i32_8 = arith.constant 0 : i32
    %10 = arith.cmpi eq, %arg1, %c0_i32_8 : i32
    %11 = arith.extui %10 : i1 to i32
    %c0_i32_9 = arith.constant 0 : i32
    %12 = arith.cmpi ne, %11, %c0_i32_9 : i32
    scf.if %12 {
      %c0_10 = arith.constant 0 : index
      %c0_11 = arith.constant 0 : index
      %13 = vector.load %arg7[%c0_10, %c0_11] : memref<128x128xf32, #tpu.memory_space<vmem>>, vector<128x128xf32>
      %c0_12 = arith.constant 0 : index
      %c0_13 = arith.constant 0 : index
      %14 = vector.load %arg5[%c0_12, %c0_13] : memref<128x128xf32, #tpu.memory_space<vmem>>, vector<128x128xf32>
      tpu.vector_store %arg5[%c0_12, %c0_13], %13 {strides = array<i32>} : memref<128x128xf32, #tpu.memory_space<vmem>>, vector<128x128xf32>,
      %c0_14 = arith.constant 0 : index
      %c0_15 = arith.constant 0 : index
      %15 = vector.load %arg4[%c0_14, %c0_15] : memref<128x128xf32, #tpu.memory_space<vmem>>, vector<128x128xf32>
      %16 = arith.addf %15, %13 : vector<128x128xf32>
      %c0_16 = arith.constant 0 : index
      %c0_17 = arith.constant 0 : index
      %17 = vector.load %arg6[%c0_16, %c0_17] : memref<128x128xf32, #tpu.memory_space<vmem>>, vector<128x128xf32>
      tpu.vector_store %arg6[%c0_16, %c0_17], %16 {strides = array<i32>} : memref<128x128xf32, #tpu.memory_space<vmem>>, vector<128x128xf32>,
    } else {
    }
    return
  }
  func.func @transform_0(%arg0: i32, %arg1: i32) -> (i32, i32) {
    %c0_i32 = arith.constant 0 : i32
    return %arg0, %arg1 : i32, i32
  }
  func.func @transform_1(%arg0: i32, %arg1: i32) -> (i32, i32) {
    %c0_i32 = arith.constant 0 : i32
    %c0_i32_0 = arith.constant 0 : i32
    return %arg1, %c0_i32 : i32, i32
  }
  func.func @transform_2(%arg0: i32, %arg1: i32) -> (i32, i32) {
    %c0_i32 = arith.constant 0 : i32
    %c0_i32_0 = arith.constant 0 : i32
    return %arg0, %c0_i32 : i32, i32
  }
  func.func @transform_3(%arg0: i32, %arg1: i32) -> (i32, i32) {
    %c0_i32 = arith.constant 0 : i32
    %c0_i32_0 = arith.constant 0 : i32
    return %arg0, %c0_i32 : i32, i32
  }
  func.func @transform_4(%arg0: i32, %arg1: i32) -> (i32, i32) {
    %c0_i32 = arith.constant 0 : i32
    %c0_i32_0 = arith.constant 0 : i32
    return %arg0, %c0_i32 : i32, i32
  }
}

module attributes {stable_mosaic.version = 11 : i64} {
  func.func @_norm_kernel(%arg0: i32, %arg1: i32, %arg2: memref<128x128xbf16, #tpu.memory_space<vmem>>, %arg3: memref<128x128xf32, #tpu.memory_space<vmem>>, %arg4: memref<128x128xf32, #tpu.memory_space<vmem>>, %arg5: memref<128x128xf32, #tpu.memory_space<vmem>>, %arg6: memref<128x128xf32, #tpu.memory_space<vmem>>, %arg7: memref<128x128xf32, #tpu.memory_space<vmem>>) attributes {dimension_semantics = [#tpu.dimension_semantics<parallel>, #tpu.dimension_semantics<arbitrary>], iteration_bounds = array<i64: 1, 1>, scalar_prefetch = 0 : i64, scratch_operands = 1 : i64, tpu.core_type = #tpu.core_type<tc>, window_params = [{transform_indices = @transform_0, window_bounds = array<i64: 128, 128>}, {transform_indices = @transform_1, window_bounds = array<i64: 128, 128>}, {transform_indices = @transform_2, window_bounds = array<i64: 128, 128>}, {transform_indices = @transform_3, window_bounds = array<i64: 128, 128>}, {transform_indices = @transform_4, window_bounds = array<i64: 128, 128>}]} {
    %c0_i32 = arith.constant 0 : i32
    %0 = arith.cmpi eq, %arg1, %c0_i32 : i32
    %1 = arith.extui %0 : i1 to i32
    %c0_i32_0 = arith.constant 0 : i32
    %2 = arith.cmpi ne, %1, %c0_i32_0 : i32
    scf.if %2 {
      %cst_10 = arith.constant 0.000000e+00 : f32
      %13 = vector.broadcast %cst_10 : f32 to vector<128x128xf32>
      %c0_11 = arith.constant 0 : index
      %c0_12 = arith.constant 0 : index
      %14 = vector.load %arg7[%c0_11, %c0_12] : memref<128x128xf32, #tpu.memory_space<vmem>>, vector<128x128xf32>
      tpu.vector_store %arg7[%c0_11, %c0_12], %13 {strides = array<i32>} : memref<128x128xf32, #tpu.memory_space<vmem>>, vector<128x128xf32>,
    } else {
    }
    %c0 = arith.constant 0 : index
    %c0_1 = arith.constant 0 : index
    %3 = vector.load %arg7[%c0, %c0_1] : memref<128x128xf32, #tpu.memory_space<vmem>>, vector<128x128xf32>
    %c0_2 = arith.constant 0 : index
    %c0_3 = arith.constant 0 : index
    %4 = vector.load %arg2[%c0_2, %c0_3] : memref<128x128xbf16, #tpu.memory_space<vmem>>, vector<128x128xbf16>
    %5 = arith.extf %4 : vector<128x128xbf16> to vector<128x128xf32>
    %c0_4 = arith.constant 0 : index
    %c0_5 = arith.constant 0 : index
    %6 = vector.load %arg3[%c0_4, %c0_5] : memref<128x128xf32, #tpu.memory_space<vmem>>, vector<128x128xf32>
    %cst = arith.constant dense<0.000000e+00> : vector<128x128xf32>
    %7 = tpu.matmul %5, %6, %cst {dimension_numbers = #tpu.dot_dimension_numbers<[1], [0], [0], [1], [0, 0, 1, 1], [], []>} : vector<128x128xf32>, vector<128x128xf32>, vector<128x128xf32> -> vector<128x128xf32>
    %8 = arith.addf %3, %7 : vector<128x128xf32>
    %c0_6 = arith.constant 0 : index
    %c0_7 = arith.constant 0 : index
    %9 = vector.load %arg7[%c0_6, %c0_7] : memref<128x128xf32, #tpu.memory_space<vmem>>, vector<128x128xf32>
    tpu.vector_store %arg7[%c0_6, %c0_7], %8 {strides = array<i32>} : memref<128x128xf32, #tpu.memory_space<vmem>>, vector<128x128xf32>,
    %c0_i32_8 = arith.constant 0 : i32
    %10 = arith.cmpi eq, %arg1, %c0_i32_8 : i32
    %11 = arith.extui %10 : i1 to i32
    %c0_i32_9 = arith.constant 0 : i32
    %12 = arith.cmpi ne, %11, %c0_i32_9 : i32
    scf.if %12 {
      %c0_10 = arith.constant 0 : index
      %c0_11 = arith.constant 0 : index
      %13 = vector.load %arg7[%c0_10, %c0_11] : memref<128x128xf32, #tpu.memory_space<vmem>>, vector<128x128xf32>
      %c0_12 = arith.constant 0 : index
      %c0_13 = arith.constant 0 : index
      %14 = vector.load %arg5[%c0_12, %c0_13] : memref<128x128xf32, #tpu.memory_space<vmem>>, vector<128x128xf32>
      tpu.vector_store %arg5[%c0_12, %c0_13], %13 {strides = array<i32>} : memref<128x128xf32, #tpu.memory_space<vmem>>, vector<128x128xf32>,
      %c0_14 = arith.constant 0 : index
      %c0_15 = arith.constant 0 : index
      %15 = vector.load %arg4[%c0_14, %c0_15] : memref<128x128xf32, #tpu.memory_space<vmem>>, vector<128x128xf32>
      %16 = arith.addf %15, %13 : vector<128x128xf32>
      %c0_16 = arith.constant 0 : index
      %c0_17 = arith.constant 0 : index
      %17 = vector.load %arg6[%c0_16, %c0_17] : memref<128x128xf32, #tpu.memory_space<vmem>>, vector<128x128xf32>
      tpu.vector_store %arg6[%c0_16, %c0_17], %16 {strides = array<i32>} : memref<128x128xf32, #tpu.memory_space<vmem>>, vector<128x128xf32>,
    } else {
    }
    return
  }
  func.func @transform_0(%arg0: i32, %arg1: i32) -> (i32, i32) {
    %c0_i32 = arith.constant 0 : i32
    return %arg0, %arg1 : i32, i32
  }
  func.func @transform_1(%arg0: i32, %arg1: i32) -> (i32, i32) {
    %c0_i32 = arith.constant 0 : i32
    %c0_i32_0 = arith.constant 0 : i32
    return %arg1, %c0_i32 : i32, i32
  }
  func.func @transform_2(%arg0: i32, %arg1: i32) -> (i32, i32) {
    %c0_i32 = arith.constant 0 : i32
    %c0_i32_0 = arith.constant 0 : i32
    return %arg0, %c0_i32 : i32, i32
  }
  func.func @transform_3(%arg0: i32, %arg1: i32) -> (i32, i32) {
    %c0_i32 = arith.constant 0 : i32
    %c0_i32_0 = arith.constant 0 : i32
    return %arg0, %c0_i32 : i32, i32
  }
  func.func @transform_4(%arg0: i32, %arg1: i32) -> (i32, i32) {
    %c0_i32 = arith.constant 0 : i32
    %c0_i32_0 = arith.constant 0 : i32
    return %arg0, %c0_i32 : i32, i32
  }
}

module attributes {stable_mosaic.version = 11 : i64} {
  func.func @_msg_kernel(%arg0: i32, %arg1: i32, %arg2: memref<128x128xbf16, #tpu.memory_space<vmem>>, %arg3: memref<128x128xf32, #tpu.memory_space<vmem>>, %arg4: memref<128x128xf32, #tpu.memory_space<vmem>>, %arg5: memref<128x128xf32, #tpu.memory_space<vmem>>, %arg6: memref<128x128xf32, #tpu.memory_space<vmem>>, %arg7: memref<128x128xf32, #tpu.memory_space<vmem>>, %arg8: memref<1x128xf32, #tpu.memory_space<vmem>>, %arg9: memref<128x128xf32, #tpu.memory_space<vmem>>, %arg10: memref<128x128xf32, #tpu.memory_space<vmem>>, %arg11: memref<128x128xf32, #tpu.memory_space<vmem>>) attributes {dimension_semantics = [#tpu.dimension_semantics<parallel>, #tpu.dimension_semantics<arbitrary>], iteration_bounds = array<i64: 1, 1>, scalar_prefetch = 0 : i64, scratch_operands = 1 : i64, tpu.core_type = #tpu.core_type<tc>, window_params = [{transform_indices = @transform_0, window_bounds = array<i64: 128, 128>}, {transform_indices = @transform_1, window_bounds = array<i64: 128, 128>}, {transform_indices = @transform_2, window_bounds = array<i64: 128, 128>}, {transform_indices = @transform_3, window_bounds = array<i64: 128, 128>}, {pipeline_mode = #tpu.pipeline_mode<synchronous>, transform_indices = @transform_4, window_bounds = array<i64: 128, 128>}, {pipeline_mode = #tpu.pipeline_mode<synchronous>, transform_indices = @transform_5, window_bounds = array<i64: 128, 128>}, {pipeline_mode = #tpu.pipeline_mode<synchronous>, transform_indices = @transform_6, window_bounds = array<i64: 1, 128>}, {transform_indices = @transform_7, window_bounds = array<i64: 128, 128>}, {transform_indices = @transform_8, window_bounds = array<i64: 128, 128>}]} {
    %c0_i32 = arith.constant 0 : i32
    %0 = arith.cmpi eq, %arg1, %c0_i32 : i32
    %1 = arith.extui %0 : i1 to i32
    %c0_i32_0 = arith.constant 0 : i32
    %2 = arith.cmpi ne, %1, %c0_i32_0 : i32
    scf.if %2 {
      %cst_10 = arith.constant 0.000000e+00 : f32
      %13 = vector.broadcast %cst_10 : f32 to vector<128x128xf32>
      %c0_11 = arith.constant 0 : index
      %c0_12 = arith.constant 0 : index
      %14 = vector.load %arg11[%c0_11, %c0_12] : memref<128x128xf32, #tpu.memory_space<vmem>>, vector<128x128xf32>
      tpu.vector_store %arg11[%c0_11, %c0_12], %13 {strides = array<i32>} : memref<128x128xf32, #tpu.memory_space<vmem>>, vector<128x128xf32>,
    } else {
    }
    %c0 = arith.constant 0 : index
    %c0_1 = arith.constant 0 : index
    %3 = vector.load %arg11[%c0, %c0_1] : memref<128x128xf32, #tpu.memory_space<vmem>>, vector<128x128xf32>
    %c0_2 = arith.constant 0 : index
    %c0_3 = arith.constant 0 : index
    %4 = vector.load %arg2[%c0_2, %c0_3] : memref<128x128xbf16, #tpu.memory_space<vmem>>, vector<128x128xbf16>
    %5 = arith.extf %4 : vector<128x128xbf16> to vector<128x128xf32>
    %c0_4 = arith.constant 0 : index
    %c0_5 = arith.constant 0 : index
    %6 = vector.load %arg3[%c0_4, %c0_5] : memref<128x128xf32, #tpu.memory_space<vmem>>, vector<128x128xf32>
    %cst = arith.constant dense<0.000000e+00> : vector<128x128xf32>
    %7 = tpu.matmul %5, %6, %cst {dimension_numbers = #tpu.dot_dimension_numbers<[1], [0], [0], [1], [0, 0, 1, 1], [], []>} : vector<128x128xf32>, vector<128x128xf32>, vector<128x128xf32> -> vector<128x128xf32>
    %8 = arith.addf %3, %7 : vector<128x128xf32>
    %c0_6 = arith.constant 0 : index
    %c0_7 = arith.constant 0 : index
    %9 = vector.load %arg11[%c0_6, %c0_7] : memref<128x128xf32, #tpu.memory_space<vmem>>, vector<128x128xf32>
    tpu.vector_store %arg11[%c0_6, %c0_7], %8 {strides = array<i32>} : memref<128x128xf32, #tpu.memory_space<vmem>>, vector<128x128xf32>,
    %c0_i32_8 = arith.constant 0 : i32
    %10 = arith.cmpi eq, %arg1, %c0_i32_8 : i32
    %11 = arith.extui %10 : i1 to i32
    %c0_i32_9 = arith.constant 0 : i32
    %12 = arith.cmpi ne, %11, %c0_i32_9 : i32
    scf.if %12 {
      %c0_10 = arith.constant 0 : index
      %c0_11 = arith.constant 0 : index
      %13 = vector.load %arg11[%c0_10, %c0_11] : memref<128x128xf32, #tpu.memory_space<vmem>>, vector<128x128xf32>
      %c0_12 = arith.constant 0 : index
      %c0_13 = arith.constant 0 : index
      %14 = vector.load %arg4[%c0_12, %c0_13] : memref<128x128xf32, #tpu.memory_space<vmem>>, vector<128x128xf32>
      %15 = arith.mulf %13, %14 : vector<128x128xf32>
      %c0_14 = arith.constant 0 : index
      %c0_15 = arith.constant 0 : index
      %16 = vector.load %arg6[%c0_14, %c0_15] : memref<128x128xf32, #tpu.memory_space<vmem>>, vector<128x128xf32>
      %cst_16 = arith.constant dense<0.000000e+00> : vector<128x128xf32>
      %17 = tpu.matmul %13, %16, %cst_16 {dimension_numbers = #tpu.dot_dimension_numbers<[1], [0], [0], [1], [0, 0, 1, 1], [], []>} : vector<128x128xf32>, vector<128x128xf32>, vector<128x128xf32> -> vector<128x128xf32>
      %c0_17 = arith.constant 0 : index
      %c0_18 = arith.constant 0 : index
      %18 = vector.load %arg7[%c0_17, %c0_18] : memref<128x128xf32, #tpu.memory_space<vmem>>, vector<128x128xf32>
      %cst_19 = arith.constant dense<0.000000e+00> : vector<128x128xf32>
      %19 = tpu.matmul %15, %18, %cst_19 {dimension_numbers = #tpu.dot_dimension_numbers<[1], [0], [0], [1], [0, 0, 1, 1], [], []>} : vector<128x128xf32>, vector<128x128xf32>, vector<128x128xf32> -> vector<128x128xf32>
      %20 = arith.addf %17, %19 : vector<128x128xf32>
      %c0_20 = arith.constant 0 : index
      %c0_21 = arith.constant 0 : index
      %21 = vector.load %arg8[%c0_20, %c0_21] : memref<1x128xf32, #tpu.memory_space<vmem>>, vector<1x128xf32>
      %22 = vector.broadcast %21 : vector<1x128xf32> to vector<128x128xf32>
      %23 = arith.addf %20, %22 : vector<128x128xf32>
      %c0_22 = arith.constant 0 : index
      %c0_23 = arith.constant 0 : index
      %24 = vector.load %arg9[%c0_22, %c0_23] : memref<128x128xf32, #tpu.memory_space<vmem>>, vector<128x128xf32>
      tpu.vector_store %arg9[%c0_22, %c0_23], %23 {strides = array<i32>} : memref<128x128xf32, #tpu.memory_space<vmem>>, vector<128x128xf32>,
      %c0_24 = arith.constant 0 : index
      %c0_25 = arith.constant 0 : index
      %25 = vector.load %arg5[%c0_24, %c0_25] : memref<128x128xf32, #tpu.memory_space<vmem>>, vector<128x128xf32>
      %26 = arith.addf %25, %23 : vector<128x128xf32>
      %c0_26 = arith.constant 0 : index
      %c0_27 = arith.constant 0 : index
      %27 = vector.load %arg10[%c0_26, %c0_27] : memref<128x128xf32, #tpu.memory_space<vmem>>, vector<128x128xf32>
      tpu.vector_store %arg10[%c0_26, %c0_27], %26 {strides = array<i32>} : memref<128x128xf32, #tpu.memory_space<vmem>>, vector<128x128xf32>,
    } else {
    }
    return
  }
  func.func @transform_0(%arg0: i32, %arg1: i32) -> (i32, i32) {
    %c0_i32 = arith.constant 0 : i32
    return %arg0, %arg1 : i32, i32
  }
  func.func @transform_1(%arg0: i32, %arg1: i32) -> (i32, i32) {
    %c0_i32 = arith.constant 0 : i32
    %c0_i32_0 = arith.constant 0 : i32
    return %arg1, %c0_i32 : i32, i32
  }
  func.func @transform_2(%arg0: i32, %arg1: i32) -> (i32, i32) {
    %c0_i32 = arith.constant 0 : i32
    %c0_i32_0 = arith.constant 0 : i32
    return %arg0, %c0_i32 : i32, i32
  }
  func.func @transform_3(%arg0: i32, %arg1: i32) -> (i32, i32) {
    %c0_i32 = arith.constant 0 : i32
    %c0_i32_0 = arith.constant 0 : i32
    return %arg0, %c0_i32 : i32, i32
  }
  func.func @transform_4(%arg0: i32, %arg1: i32) -> (i32, i32) {
    %c0_i32 = arith.constant 0 : i32
    %c0_i32_0 = arith.constant 0 : i32
    %c0_i32_1 = arith.constant 0 : i32
    return %c0_i32, %c0_i32_0 : i32, i32
  }
  func.func @transform_5(%arg0: i32, %arg1: i32) -> (i32, i32) {
    %c0_i32 = arith.constant 0 : i32
    %c0_i32_0 = arith.constant 0 : i32
    %c0_i32_1 = arith.constant 0 : i32
    return %c0_i32, %c0_i32_0 : i32, i32
  }
  func.func @transform_6(%arg0: i32, %arg1: i32) -> (i32, i32) {
    %c0_i32 = arith.constant 0 : i32
    %c0_i32_0 = arith.constant 0 : i32
    %c0_i32_1 = arith.constant 0 : i32
    return %c0_i32, %c0_i32_0 : i32, i32
  }
  func.func @transform_7(%arg0: i32, %arg1: i32) -> (i32, i32) {
    %c0_i32 = arith.constant 0 : i32
    %c0_i32_0 = arith.constant 0 : i32
    return %arg0, %c0_i32 : i32, i32
  }
  func.func @transform_8(%arg0: i32, %arg1: i32) -> (i32, i32) {
    %c0_i32 = arith.constant 0 : i32
    %c0_i32_0 = arith.constant 0 : i32
    return %arg0, %c0_i32 : i32, i32
  }
}

</mosaic_0001>

<llo_original>
// kernel: hgcn_gg_prefer_forward.5
$region0: #{hgcn_gg_prefer_forward.5}
  #allocation0 [shape = 'u32[]', space=smem, size = 0x4, offset = 0x4, fixed_abs, tag = 'smem constant byte address 0x4 - core index']
  #allocation1 [shape = 'u32[72,128]{1,0:T(1,128)}', space=vmem, size = 0x9000, scoped, tag = 'internal scratch']
  #allocation2 [shape = 'f32[128,128]{1,0:T(8,128)}', space=vmem, size = 0x10000, scoped, tag = 'scratch operand']
  %s0 = inlined_call_operand.vmem [shape: bf16[128,128], index: 0, kind: input, shape index: {}]
  %s1 = inlined_call_operand.vmem [shape: f32[128,128], index: 1, kind: input, shape index: {}]
  %s2 = inlined_call_operand.vmem [shape: f32[128,128], index: 2, kind: input, shape index: {}]
  %s3 = inlined_call_operand.vmem [shape: f32[128,128], index: 3, kind: output, shape index: {0}]
  %s4 = inlined_call_operand.vmem [shape: f32[128,128], index: 4, kind: output, shape index: {1}]
  %5 = xla_tuple %s3, %s4
  %s6 = sld [smem:[#allocation0]]
  $region38: #{hgcn_gg_prefer_forward.5} parent=0
    _
  %s8 = ssub.s32 1, %s6
  %s9 = scalar_select 0, %s8, %s6
  // Predicated region
  $region2: #{hgcn_gg_prefer_forward.5} parent=0 // pred_check
    _
  $region3: #{hgcn_gg_prefer_forward.5} parent=0 // pred_check_branch
    %11 = sbr.rel (0) target = $region5
  $region4: #{hgcn_gg_prefer_forward.5} parent=0 // pred_region
    _
  $region5: #{hgcn_gg_prefer_forward.5} parent=0 // pred_fallthru
    _
  // Predicated region
  $region6: #{hgcn_gg_prefer_forward.5} parent=0 // pred_check
    _
  $region7: #{hgcn_gg_prefer_forward.5} parent=0 // pred_check_branch
    %13 = sbr.rel (0) target = $region9
  $region8: #{hgcn_gg_prefer_forward.5} parent=0 // pred_region
    _
  $region9: #{hgcn_gg_prefer_forward.5} parent=0 // pred_fallthru
    _
  // Predicated region
  $region10: #{hgcn_gg_prefer_forward.5} parent=0 // pred_check
    _
  $region11: #{hgcn_gg_prefer_forward.5} parent=0 // pred_check_branch
    %15 = sbr.rel (0) target = $region13
  $region12: #{hgcn_gg_prefer_forward.5} parent=0 // pred_region
    _
  $region13: #{hgcn_gg_prefer_forward.5} parent=0 // pred_fallthru
    _
  %p16 = scmp.eq.s32.totalorder 0, 0
  // Predicated region
  $region14: #{hgcn_gg_prefer_forward.5} parent=0 // pred_check
    %p17 = pneg %p16
  $region15: #{hgcn_gg_prefer_forward.5} parent=0 // pred_check_branch
    %19 = sbr.rel (%p17) target = $region17
  $region16: #{hgcn_gg_prefer_forward.5} parent=0 // pred_region
    %20 = vst [vmem:[#allocation2] sm:$0xff] 0.0
    %21 = vst [vmem:[#allocation2 + $0x8] sm:$0xff] 0.0
    %22 = vst [vmem:[#allocation2 + $0x10] sm:$0xff] 0.0
    %23 = vst [vmem:[#allocation2 + $0x18] sm:$0xff] 0.0
    %24 = vst [vmem:[#allocation2 + $0x20] sm:$0xff] 0.0
    %25 = vst [vmem:[#allocation2 + $0x28] sm:$0xff] 0.0
    %26 = vst [vmem:[#allocation2 + $0x30] sm:$0xff] 0.0
    %27 = vst [vmem:[#allocation2 + $0x38] sm:$0xff] 0.0
    %28 = vst [vmem:[#allocation2 + $0x40] sm:$0xff] 0.0
    %29 = vst [vmem:[#allocation2 + $0x48] sm:$0xff] 0.0
    %30 = vst [vmem:[#allocation2 + $0x50] sm:$0xff] 0.0
    %31 = vst [vmem:[#allocation2 + $0x58] sm:$0xff] 0.0
    %32 = vst [vmem:[#allocation2 + $0x60] sm:$0xff] 0.0
    %33 = vst [vmem:[#allocation2 + $0x68] sm:$0xff] 0.0
    %34 = vst [vmem:[#allocation2 + $0x70] sm:$0xff] 0.0
    %35 = vst [vmem:[#allocation2 + $0x78] sm:$0xff] 0.0
  $region17: #{hgcn_gg_prefer_forward.5} parent=0 // pred_fallthru
    _
  %v36 = vld [vmem:[#allocation2] sm:$0xff]
  %v37 = vld [vmem:[#allocation2 + $0x8] sm:$0xff]
  %v38 = vld [vmem:[#allocation2 + $0x10] sm:$0xff]
  %v39 = vld [vmem:[#allocation2 + $0x18] sm:$0xff]
  %v40 = vld [vmem:[#allocation2 + $0x20] sm:$0xff]
  %v41 = vld [vmem:[#allocation2 + $0x28] sm:$0xff]
  %v42 = vld [vmem:[#allocation2 + $0x30] sm:$0xff]
  %v43 = vld [vmem:[#allocation2 + $0x38] sm:$0xff]
  %v44 = vld [vmem:[#allocation2 + $0x40] sm:$0xff]
  %v45 = vld [vmem:[#allocation2 + $0x48] sm:$0xff]
  %v46 = vld [vmem:[#allocation2 + $0x50] sm:$0xff]
  %v47 = vld [vmem:[#allocation2 + $0x58] sm:$0xff]
  %v48 = vld [vmem:[#allocation2 + $0x60] sm:$0xff]
  %v49 = vld [vmem:[#allocation2 + $0x68] sm:$0xff]
  %v50 = vld [vmem:[#allocation2 + $0x70] sm:$0xff]
  %v51 = vld [vmem:[#allocation2 + $0x78] sm:$0xff]
  %v52 = vld [vmem:[%s0] sm:$0xf]
  %v53 = vld [vmem:[%s0 + $0x4] sm:$0xf]
  %v54 = vld [vmem:[%s0 + $0x8] sm:$0xf]
  %v55 = vld [vmem:[%s0 + $0xc] sm:$0xf]
  %v56 = vld [vmem:[%s0 + $0x10] sm:$0xf]
  %v57 = vld [vmem:[%s0 + $0x14] sm:$0xf]
  %v58 = vld [vmem:[%s0 + $0x18] sm:$0xf]
  %v59 = vld [vmem:[%s0 + $0x1c] sm:$0xf]
  %v60 = vld [vmem:[%s0 + $0x20] sm:$0xf]
  %v61 = vld [vmem:[%s0 + $0x24] sm:$0xf]
  %v62 = vld [vmem:[%s0 + $0x28] sm:$0xf]
  %v63 = vld [vmem:[%s0 + $0x2c] sm:$0xf]
  %v64 = vld [vmem:[%s0 + $0x30] sm:$0xf]
  %v65 = vld [vmem:[%s0 + $0x34] sm:$0xf]
  %v66 = vld [vmem:[%s0 + $0x38] sm:$0xf]
  %v67 = vld [vmem:[%s0 + $0x3c] sm:$0xf]
  %v68 = vunpack.c.l.bf16 %v52
  %v69 = vunpack.c.l.bf16 %v53
  %v70 = vunpack.c.l.bf16 %v54
  %v71 = vunpack.c.l.bf16 %v55
  %v72 = vunpack.c.l.bf16 %v56
  %v73 = vunpack.c.l.bf16 %v57
  %v74 = vunpack.c.l.bf16 %v58
  %v75 = vunpack.c.l.bf16 %v59
  %v76 = vunpack.c.l.bf16 %v60
  %v77 = vunpack.c.l.bf16 %v61
  %v78 = vunpack.c.l.bf16 %v62
  %v79 = vunpack.c.l.bf16 %v63
  %v80 = vunpack.c.l.bf16 %v64
  %v81 = vunpack.c.l.bf16 %v65
  %v82 = vunpack.c.l.bf16 %v66
  %v83 = vunpack.c.l.bf16 %v67
  %v84 = vld [vmem:[%s1] sm:$0xff]
  %v85 = vld [vmem:[%s1 + $0x8] sm:$0xff]
  %v86 = vld [vmem:[%s1 + $0x10] sm:$0xff]
  %v87 = vld [vmem:[%s1 + $0x18] sm:$0xff]
  %v88 = vld [vmem:[%s1 + $0x20] sm:$0xff]
  %v89 = vld [vmem:[%s1 + $0x28] sm:$0xff]
  %v90 = vld [vmem:[%s1 + $0x30] sm:$0xff]
  %v91 = vld [vmem:[%s1 + $0x38] sm:$0xff]
  %v92 = vld [vmem:[%s1 + $0x40] sm:$0xff]
  %v93 = vld [vmem:[%s1 + $0x48] sm:$0xff]
  %v94 = vld [vmem:[%s1 + $0x50] sm:$0xff]
  %v95 = vld [vmem:[%s1 + $0x58] sm:$0xff]
  %v96 = vld [vmem:[%s1 + $0x60] sm:$0xff]
  %v97 = vld [vmem:[%s1 + $0x68] sm:$0xff]
  %v98 = vld [vmem:[%s1 + $0x70] sm:$0xff]
  %v99 = vld [vmem:[%s1 + $0x78] sm:$0xff]
  %100 = vmatpush.msra.mxu0 %v99
  %101 = vmatpush.msra.mxu0 %v98
  %102 = vmatpush.msra.mxu0 %v97
  %103 = vmatpush.msra.mxu0 %v96
  %104 = vmatpush.msra.mxu0 %v95
  %105 = vmatpush.msra.mxu0 %v94
  %106 = vmatpush.msra.mxu0 %v93
  %107 = vmatpush.msra.mxu0 %v92
  %108 = vmatpush.msra.mxu0 %v91
  %109 = vmatpush.msra.mxu0 %v90
  %110 = vmatpush.msra.mxu0 %v89
  %111 = vmatpush.msra.mxu0 %v88
  %112 = vmatpush.msra.mxu0 %v87
  %113 = vmatpush.msra.mxu0 %v86
  %114 = vmatpush.msra.mxu0 %v85
  %115 = vmatpush.msra.mxu0 %v84
  %116 = vmatmul.f32.gmra.mxu0 %v68
  %v117 = vpop.f32.mrf.mxu0
  %v118 = vadd.f32 0.0, %v117
  %119 = vmatmul.f32.gmra.mxu0 %v69
  %v120 = vpop.f32.mrf.mxu0
  %v121 = vadd.f32 0.0, %v120
  %122 = vmatmul.f32.gmra.mxu0 %v70
  %v123 = vpop.f32.mrf.mxu0
  %v124 = vadd.f32 0.0, %v123
  %125 = vmatmul.f32.gmra.mxu0 %v71
  %v126 = vpop.f32.mrf.mxu0
  %v127 = vadd.f32 0.0, %v126
  %128 = vmatmul.f32.gmra.mxu0 %v72
  %v129 = vpop.f32.mrf.mxu0
  %v130 = vadd.f32 0.0, %v129
  %131 = vmatmul.f32.gmra.mxu0 %v73
  %v132 = vpop.f32.mrf.mxu0
  %v133 = vadd.f32 0.0, %v132
  %134 = vmatmul.f32.gmra.mxu0 %v74
  %v135 = vpop.f32.mrf.mxu0
  %v136 = vadd.f32 0.0, %v135
  %137 = vmatmul.f32.gmra.mxu0 %v75
  %v138 = vpop.f32.mrf.mxu0
  %v139 = vadd.f32 0.0, %v138
  %140 = vmatmul.f32.gmra.mxu0 %v76
  %v141 = vpop.f32.mrf.mxu0
  %v142 = vadd.f32 0.0, %v141
  %143 = vmatmul.f32.gmra.mxu0 %v77
  %v144 = vpop.f32.mrf.mxu0
  %v145 = vadd.f32 0.0, %v144
  %146 = vmatmul.f32.gmra.mxu0 %v78
  %v147 = vpop.f32.mrf.mxu0
  %v148 = vadd.f32 0.0, %v147
  %149 = vmatmul.f32.gmra.mxu0 %v79
  %v150 = vpop.f32.mrf.mxu0
  %v151 = vadd.f32 0.0, %v150
  %152 = vmatmul.f32.gmra.mxu0 %v80
  %v153 = vpop.f32.mrf.mxu0
  %v154 = vadd.f32 0.0, %v153
  %155 = vmatmul.f32.gmra.mxu0 %v81
  %v156 = vpop.f32.mrf.mxu0
  %v157 = vadd.f32 0.0, %v156
  %158 = vmatmul.f32.gmra.mxu0 %v82
  %v159 = vpop.f32.mrf.mxu0
  %v160 = vadd.f32 0.0, %v159
  %161 = vmatmul.f32.gmra.mxu0 %v83
  %v162 = vpop.f32.mrf.mxu0
  %v163 = vadd.f32 0.0, %v162
  %164 = vdwg.mxu0
  %v165 = vadd.f32 %v36, %v118
  %v166 = vadd.f32 %v37, %v121
  %v167 = vadd.f32 %v38, %v124
  %v168 = vadd.f32 %v39, %v127
  %v169 = vadd.f32 %v40, %v130
  %v170 = vadd.f32 %v41, %v133
  %v171 = vadd.f32 %v42, %v136
  %v172 = vadd.f32 %v43, %v139
  %v173 = vadd.f32 %v44, %v142
  %v174 = vadd.f32 %v45, %v145
  %v175 = vadd.f32 %v46, %v148
  %v176 = vadd.f32 %v47, %v151
  %v177 = vadd.f32 %v48, %v154
  %v178 = vadd.f32 %v49, %v157
  %v179 = vadd.f32 %v50, %v160
  %v180 = vadd.f32 %v51, %v163
  %181 = vst [vmem:[#allocation2] sm:$0xff] %v165
  %182 = vst [vmem:[#allocation2 + $0x8] sm:$0xff] %v166
  %183 = vst [vmem:[#allocation2 + $0x10] sm:$0xff] %v167
  %184 = vst [vmem:[#allocation2 + $0x18] sm:$0xff] %v168
  %185 = vst [vmem:[#allocation2 + $0x20] sm:$0xff] %v169
  %186 = vst [vmem:[#allocation2 + $0x28] sm:$0xff] %v170
  %187 = vst [vmem:[#allocation2 + $0x30] sm:$0xff] %v171
  %188 = vst [vmem:[#allocation2 + $0x38] sm:$0xff] %v172
  %189 = vst [vmem:[#allocation2 + $0x40] sm:$0xff] %v173
  %190 = vst [vmem:[#allocation2 + $0x48] sm:$0xff] %v174
  %191 = vst [vmem:[#allocation2 + $0x50] sm:$0xff] %v175
  %192 = vst [vmem:[#allocation2 + $0x58] sm:$0xff] %v176
  %193 = vst [vmem:[#allocation2 + $0x60] sm:$0xff] %v177
  %194 = vst [vmem:[#allocation2 + $0x68] sm:$0xff] %v178
  %195 = vst [vmem:[#allocation2 + $0x70] sm:$0xff] %v179
  %196 = vst [vmem:[#allocation2 + $0x78] sm:$0xff] %v180
  // Predicated region
  $region18: #{hgcn_gg_prefer_forward.5} parent=0 // pred_check
    %p197 = pneg %p16
  $region19: #{hgcn_gg_prefer_forward.5} parent=0 // pred_check_branch
    %199 = sbr.rel (%p197) target = $region21
  $region20: #{hgcn_gg_prefer_forward.5} parent=0 // pred_region
    %v200 = vld [vmem:[#allocation2] sm:$0xff]
    %v201 = vld [vmem:[#allocation2 + $0x8] sm:$0xff]
    %v202 = vld [vmem:[#allocation2 + $0x10] sm:$0xff]
    %v203 = vld [vmem:[#allocation2 + $0x18] sm:$0xff]
    %v204 = vld [vmem:[#allocation2 + $0x20] sm:$0xff]
    %v205 = vld [vmem:[#allocation2 + $0x28] sm:$0xff]
    %v206 = vld [vmem:[#allocation2 + $0x30] sm:$0xff]
    %v207 = vld [vmem:[#allocation2 + $0x38] sm:$0xff]
    %v208 = vld [vmem:[#allocation2 + $0x40] sm:$0xff]
    %v209 = vld [vmem:[#allocation2 + $0x48] sm:$0xff]
    %v210 = vld [vmem:[#allocation2 + $0x50] sm:$0xff]
    %v211 = vld [vmem:[#allocation2 + $0x58] sm:$0xff]
    %v212 = vld [vmem:[#allocation2 + $0x60] sm:$0xff]
    %v213 = vld [vmem:[#allocation2 + $0x68] sm:$0xff]
    %v214 = vld [vmem:[#allocation2 + $0x70] sm:$0xff]
    %v215 = vld [vmem:[#allocation2 + $0x78] sm:$0xff]
    %216 = vst [vmem:[%s3] sm:$0xff] %v200
    %217 = vst [vmem:[%s3 + $0x8] sm:$0xff] %v201
    %218 = vst [vmem:[%s3 + $0x10] sm:$0xff] %v202
    %219 = vst [vmem:[%s3 + $0x18] sm:$0xff] %v203
    %220 = vst [vmem:[%s3 + $0x20] sm:$0xff] %v204
    %221 = vst [vmem:[%s3 + $0x28] sm:$0xff] %v205
    %222 = vst [vmem:[%s3 + $0x30] sm:$0xff] %v206
    %223 = vst [vmem:[%s3 + $0x38] sm:$0xff] %v207
    %224 = vst [vmem:[%s3 + $0x40] sm:$0xff] %v208
    %225 = vst [vmem:[%s3 + $0x48] sm:$0xff] %v209
    %226 = vst [vmem:[%s3 + $0x50] sm:$0xff] %v210
    %227 = vst [vmem:[%s3 + $0x58] sm:$0xff] %v211
    %228 = vst [vmem:[%s3 + $0x60] sm:$0xff] %v212
    %229 = vst [vmem:[%s3 + $0x68] sm:$0xff] %v213
    %230 = vst [vmem:[%s3 + $0x70] sm:$0xff] %v214
    %231 = vst [vmem:[%s3 + $0x78] sm:$0xff] %v215
    %v232 = vld [vmem:[%s2] sm:$0xff]
    %v233 = vld [vmem:[%s2 + $0x8] sm:$0xff]
    %v234 = vld [vmem:[%s2 + $0x10] sm:$0xff]
    %v235 = vld [vmem:[%s2 + $0x18] sm:$0xff]
    %v236 = vld [vmem:[%s2 + $0x20] sm:$0xff]
    %v237 = vld [vmem:[%s2 + $0x28] sm:$0xff]
    %v238 = vld [vmem:[%s2 + $0x30] sm:$0xff]
    %v239 = vld [vmem:[%s2 + $0x38] sm:$0xff]
    %v240 = vld [vmem:[%s2 + $0x40] sm:$0xff]
    %v241 = vld [vmem:[%s2 + $0x48] sm:$0xff]
    %v242 = vld [vmem:[%s2 + $0x50] sm:$0xff]
    %v243 = vld [vmem:[%s2 + $0x58] sm:$0xff]
    %v244 = vld [vmem:[%s2 + $0x60] sm:$0xff]
    %v245 = vld [vmem:[%s2 + $0x68] sm:$0xff]
    %v246 = vld [vmem:[%s2 + $0x70] sm:$0xff]
    %v247 = vld [vmem:[%s2 + $0x78] sm:$0xff]
    %v248 = vadd.f32 %v232, %v200
    %v249 = vadd.f32 %v233, %v201
    %v250 = vadd.f32 %v234, %v202
    %v251 = vadd.f32 %v235, %v203
    %v252 = vadd.f32 %v236, %v204
    %v253 = vadd.f32 %v237, %v205
    %v254 = vadd.f32 %v238, %v206
    %v255 = vadd.f32 %v239, %v207
    %v256 = vadd.f32 %v240, %v208
    %v257 = vadd.f32 %v241, %v209
    %v258 = vadd.f32 %v242, %v210
    %v259 = vadd.f32 %v243, %v211
    %v260 = vadd.f32 %v244, %v212
    %v261 = vadd.f32 %v245, %v213
    %v262 = vadd.f32 %v246, %v214
    %v263 = vadd.f32 %v247, %v215
    %264 = vst [vmem:[%s4] sm:$0xff] %v248
    %265 = vst [vmem:[%s4 + $0x8] sm:$0xff] %v249
    %266 = vst [vmem:[%s4 + $0x10] sm:$0xff] %v250
    %267 = vst [vmem:[%s4 + $0x18] sm:$0xff] %v251
    %268 = vst [vmem:[%s4 + $0x20] sm:$0xff] %v252
    %269 = vst [vmem:[%s4 + $0x28] sm:$0xff] %v253
    %270 = vst [vmem:[%s4 + $0x30] sm:$0xff] %v254
    %271 = vst [vmem:[%s4 + $0x38] sm:$0xff] %v255
    %272 = vst [vmem:[%s4 + $0x40] sm:$0xff] %v256
    %273 = vst [vmem:[%s4 + $0x48] sm:$0xff] %v257
    %274 = vst [vmem:[%s4 + $0x50] sm:$0xff] %v258
    %275 = vst [vmem:[%s4 + $0x58] sm:$0xff] %v259
    %276 = vst [vmem:[%s4 + $0x60] sm:$0xff] %v260
    %277 = vst [vmem:[%s4 + $0x68] sm:$0xff] %v261
    %278 = vst [vmem:[%s4 + $0x70] sm:$0xff] %v262
    %279 = vst [vmem:[%s4 + $0x78] sm:$0xff] %v263
  $region21: #{hgcn_gg_prefer_forward.5} parent=0 // pred_fallthru
    _
  // Predicated region
  $region22: #{hgcn_gg_prefer_forward.5} parent=0 // pred_check
    _
  $region23: #{hgcn_gg_prefer_forward.5} parent=0 // pred_check_branch
    %281 = sbr.rel (0) target = $region25
  $region24: #{hgcn_gg_prefer_forward.5} parent=0 // pred_region
    _
  $region25: #{hgcn_gg_prefer_forward.5} parent=0 // pred_fallthru
    _
  // Predicated region
  $region26: #{hgcn_gg_prefer_forward.5} parent=0 // pred_check
    _
  $region27: #{hgcn_gg_prefer_forward.5} parent=0 // pred_check_branch
    %283 = sbr.rel (0) target = $region29
  $region28: #{hgcn_gg_prefer_forward.5} parent=0 // pred_region
    _
  $region29: #{hgcn_gg_prefer_forward.5} parent=0 // pred_fallthru
    _
  // Predicated region
  $region30: #{hgcn_gg_prefer_forward.5} parent=0 // pred_check
    _
  $region31: #{hgcn_gg_prefer_forward.5} parent=0 // pred_check_branch
    %285 = sbr.rel (0) target = $region33
  $region32: #{hgcn_gg_prefer_forward.5} parent=0 // pred_region
    _
  $region33: #{hgcn_gg_prefer_forward.5} parent=0 // pred_fallthru
    _
  // Predicated region
  $region34: #{hgcn_gg_prefer_forward.5} parent=0 // pred_check
    _
  $region35: #{hgcn_gg_prefer_forward.5} parent=0 // pred_check_branch
    %287 = sbr.rel (0) target = $region37
  $region36: #{hgcn_gg_prefer_forward.5} parent=0 // pred_region
    _
  $region37: #{hgcn_gg_prefer_forward.5} parent=0 // pred_fallthru
    _

// kernel: hgcn_gg_prefer_forward.7
$region0: #{hgcn_gg_prefer_forward.7}
  #allocation0 [shape = 'u32[]', space=smem, size = 0x4, offset = 0x4, fixed_abs, tag = 'smem constant byte address 0x4 - core index']
  #allocation1 [shape = 'u32[72,128]{1,0:T(1,128)}', space=vmem, size = 0x9000, scoped, tag = 'internal scratch']
  #allocation2 [shape = 'f32[128,128]{1,0:T(8,128)}', space=vmem, size = 0x10000, scoped, tag = 'scratch operand']
  %s0 = inlined_call_operand.vmem [shape: bf16[128,128], index: 0, kind: input, shape index: {}]
  %s1 = inlined_call_operand.vmem [shape: f32[128,128], index: 1, kind: input, shape index: {}]
  %s2 = inlined_call_operand.vmem [shape: f32[128,128], index: 2, kind: input, shape index: {}]
  %s3 = inlined_call_operand.hbm [shape: f32[128,128], index: 3, kind: output, shape index: {0}]
  %s4 = inlined_call_operand.vmem [shape: f32[128,128], index: 4, kind: output, shape index: {1}]
  %5 = xla_tuple %s3, %s4
  %s6 = sld [smem:[#allocation0]]
  $region38: #{hgcn_gg_prefer_forward.7} parent=0
    _
  %s8 = ssub.s32 1, %s6
  %s9 = scalar_select 0, %s8, %s6
  $region1: #{hgcn_gg_prefer_forward.7} parent=0
    #allocation3 [shape = 'u8[65536]{0}', space=vmem, size = 0x10000, scoped, tag = 'output window, operand 0, single buffered']
    #allocation4 [shape = 's32[1]{0}', space=sflag, size = 0x4, scoped, tag = 'scoped memory for hgcn_gg_prefer_forward.7']
    %10 = vsyncpa [#allocation4], 0
    // Predicated region
    $region2: #{hgcn_gg_prefer_forward.7} parent=1 // pred_check
      _
    $region3: #{hgcn_gg_prefer_forward.7} parent=1 // pred_check_branch
      %12 = sbr.rel (0) target = $region5
    $region4: #{hgcn_gg_prefer_forward.7} parent=1 // pred_region
      _
    $region5: #{hgcn_gg_prefer_forward.7} parent=1 // pred_fallthru
      _
    // Predicated region
    $region6: #{hgcn_gg_prefer_forward.7} parent=1 // pred_check
      _
    $region7: #{hgcn_gg_prefer_forward.7} parent=1 // pred_check_branch
      %14 = sbr.rel (0) target = $region9
    $region8: #{hgcn_gg_prefer_forward.7} parent=1 // pred_region
      _
    $region9: #{hgcn_gg_prefer_forward.7} parent=1 // pred_fallthru
      _
    // Predicated region
    $region10: #{hgcn_gg_prefer_forward.7} parent=1 // pred_check
      _
    $region11: #{hgcn_gg_prefer_forward.7} parent=1 // pred_check_branch
      %16 = sbr.rel (0) target = $region13
    $region12: #{hgcn_gg_prefer_forward.7} parent=1 // pred_region
      _
    $region13: #{hgcn_gg_prefer_forward.7} parent=1 // pred_fallthru
      _
    %p17 = scmp.eq.s32.totalorder 0, 0
    // Predicated region
    $region14: #{hgcn_gg_prefer_forward.7} parent=1 // pred_check
      %p18 = pneg %p17
    $region15: #{hgcn_gg_prefer_forward.7} parent=1 // pred_check_branch
      %20 = sbr.rel (%p18) target = $region17
    $region16: #{hgcn_gg_prefer_forward.7} parent=1 // pred_region
      %21 = vst [vmem:[#allocation2] sm:$0xff] 0.0
      %22 = vst [vmem:[#allocation2 + $0x8] sm:$0xff] 0.0
      %23 = vst [vmem:[#allocation2 + $0x10] sm:$0xff] 0.0
      %24 = vst [vmem:[#allocation2 + $0x18] sm:$0xff] 0.0
      %25 = vst [vmem:[#allocation2 + $0x20] sm:$0xff] 0.0
      %26 = vst [vmem:[#allocation2 + $0x28] sm:$0xff] 0.0
      %27 = vst [vmem:[#allocation2 + $0x30] sm:$0xff] 0.0
      %28 = vst [vmem:[#allocation2 + $0x38] sm:$0xff] 0.0
      %29 = vst [vmem:[#allocation2 + $0x40] sm:$0xff] 0.0
      %30 = vst [vmem:[#allocation2 + $0x48] sm:$0xff] 0.0
      %31 = vst [vmem:[#allocation2 + $0x50] sm:$0xff] 0.0
      %32 = vst [vmem:[#allocation2 + $0x58] sm:$0xff] 0.0
      %33 = vst [vmem:[#allocation2 + $0x60] sm:$0xff] 0.0
      %34 = vst [vmem:[#allocation2 + $0x68] sm:$0xff] 0.0
      %35 = vst [vmem:[#allocation2 + $0x70] sm:$0xff] 0.0
      %36 = vst [vmem:[#allocation2 + $0x78] sm:$0xff] 0.0
    $region17: #{hgcn_gg_prefer_forward.7} parent=1 // pred_fallthru
      _
    %v37 = vld [vmem:[#allocation2] sm:$0xff]
    %v38 = vld [vmem:[#allocation2 + $0x8] sm:$0xff]
    %v39 = vld [vmem:[#allocation2 + $0x10] sm:$0xff]
    %v40 = vld [vmem:[#allocation2 + $0x18] sm:$0xff]
    %v41 = vld [vmem:[#allocation2 + $0x20] sm:$0xff]
    %v42 = vld [vmem:[#allocation2 + $0x28] sm:$0xff]
    %v43 = vld [vmem:[#allocation2 + $0x30] sm:$0xff]
    %v44 = vld [vmem:[#allocation2 + $0x38] sm:$0xff]
    %v45 = vld [vmem:[#allocation2 + $0x40] sm:$0xff]
    %v46 = vld [vmem:[#allocation2 + $0x48] sm:$0xff]
    %v47 = vld [vmem:[#allocation2 + $0x50] sm:$0xff]
    %v48 = vld [vmem:[#allocation2 + $0x58] sm:$0xff]
    %v49 = vld [vmem:[#allocation2 + $0x60] sm:$0xff]
    %v50 = vld [vmem:[#allocation2 + $0x68] sm:$0xff]
    %v51 = vld [vmem:[#allocation2 + $0x70] sm:$0xff]
    %v52 = vld [vmem:[#allocation2 + $0x78] sm:$0xff]
    %v53 = vld [vmem:[%s0] sm:$0xf]
    %v54 = vld [vmem:[%s0 + $0x4] sm:$0xf]
    %v55 = vld [vmem:[%s0 + $0x8] sm:$0xf]
    %v56 = vld [vmem:[%s0 + $0xc] sm:$0xf]
    %v57 = vld [vmem:[%s0 + $0x10] sm:$0xf]
    %v58 = vld [vmem:[%s0 + $0x14] sm:$0xf]
    %v59 = vld [vmem:[%s0 + $0x18] sm:$0xf]
    %v60 = vld [vmem:[%s0 + $0x1c] sm:$0xf]
    %v61 = vld [vmem:[%s0 + $0x20] sm:$0xf]
    %v62 = vld [vmem:[%s0 + $0x24] sm:$0xf]
    %v63 = vld [vmem:[%s0 + $0x28] sm:$0xf]
    %v64 = vld [vmem:[%s0 + $0x2c] sm:$0xf]
    %v65 = vld [vmem:[%s0 + $0x30] sm:$0xf]
    %v66 = vld [vmem:[%s0 + $0x34] sm:$0xf]
    %v67 = vld [vmem:[%s0 + $0x38] sm:$0xf]
    %v68 = vld [vmem:[%s0 + $0x3c] sm:$0xf]
    %v69 = vunpack.c.l.bf16 %v53
    %v70 = vunpack.c.l.bf16 %v54
    %v71 = vunpack.c.l.bf16 %v55
    %v72 = vunpack.c.l.bf16 %v56
    %v73 = vunpack.c.l.bf16 %v57
    %v74 = vunpack.c.l.bf16 %v58
    %v75 = vunpack.c.l.bf16 %v59
    %v76 = vunpack.c.l.bf16 %v60
    %v77 = vunpack.c.l.bf16 %v61
    %v78 = vunpack.c.l.bf16 %v62
    %v79 = vunpack.c.l.bf16 %v63
    %v80 = vunpack.c.l.bf16 %v64
    %v81 = vunpack.c.l.bf16 %v65
    %v82 = vunpack.c.l.bf16 %v66
    %v83 = vunpack.c.l.bf16 %v67
    %v84 = vunpack.c.l.bf16 %v68
    %v85 = vld [vmem:[%s1] sm:$0xff]
    %v86 = vld [vmem:[%s1 + $0x8] sm:$0xff]
    %v87 = vld [vmem:[%s1 + $0x10] sm:$0xff]
    %v88 = vld [vmem:[%s1 + $0x18] sm:$0xff]
    %v89 = vld [vmem:[%s1 + $0x20] sm:$0xff]
    %v90 = vld [vmem:[%s1 + $0x28] sm:$0xff]
    %v91 = vld [vmem:[%s1 + $0x30] sm:$0xff]
    %v92 = vld [vmem:[%s1 + $0x38] sm:$0xff]
    %v93 = vld [vmem:[%s1 + $0x40] sm:$0xff]
    %v94 = vld [vmem:[%s1 + $0x48] sm:$0xff]
    %v95 = vld [vmem:[%s1 + $0x50] sm:$0xff]
    %v96 = vld [vmem:[%s1 + $0x58] sm:$0xff]
    %v97 = vld [vmem:[%s1 + $0x60] sm:$0xff]
    %v98 = vld [vmem:[%s1 + $0x68] sm:$0xff]
    %v99 = vld [vmem:[%s1 + $0x70] sm:$0xff]
    %v100 = vld [vmem:[%s1 + $0x78] sm:$0xff]
    %101 = vmatpush.msra.mxu0 %v100
    %102 = vmatpush.msra.mxu0 %v99
    %103 = vmatpush.msra.mxu0 %v98
    %104 = vmatpush.msra.mxu0 %v97
    %105 = vmatpush.msra.mxu0 %v96
    %106 = vmatpush.msra.mxu0 %v95
    %107 = vmatpush.msra.mxu0 %v94
    %108 = vmatpush.msra.mxu0 %v93
    %109 = vmatpush.msra.mxu0 %v92
    %110 = vmatpush.msra.mxu0 %v91
    %111 = vmatpush.msra.mxu0 %v90
    %112 = vmatpush.msra.mxu0 %v89
    %113 = vmatpush.msra.mxu0 %v88
    %114 = vmatpush.msra.mxu0 %v87
    %115 = vmatpush.msra.mxu0 %v86
    %116 = vmatpush.msra.mxu0 %v85
    %117 = vmatmul.f32.gmra.mxu0 %v69
    %v118 = vpop.f32.mrf.mxu0
    %v119 = vadd.f32 0.0, %v118
    %120 = vmatmul.f32.gmra.mxu0 %v70
    %v121 = vpop.f32.mrf.mxu0
    %v122 = vadd.f32 0.0, %v121
    %123 = vmatmul.f32.gmra.mxu0 %v71
    %v124 = vpop.f32.mrf.mxu0
    %v125 = vadd.f32 0.0, %v124
    %126 = vmatmul.f32.gmra.mxu0 %v72
    %v127 = vpop.f32.mrf.mxu0
    %v128 = vadd.f32 0.0, %v127
    %129 = vmatmul.f32.gmra.mxu0 %v73
    %v130 = vpop.f32.mrf.mxu0
    %v131 = vadd.f32 0.0, %v130
    %132 = vmatmul.f32.gmra.mxu0 %v74
    %v133 = vpop.f32.mrf.mxu0
    %v134 = vadd.f32 0.0, %v133
    %135 = vmatmul.f32.gmra.mxu0 %v75
    %v136 = vpop.f32.mrf.mxu0
    %v137 = vadd.f32 0.0, %v136
    %138 = vmatmul.f32.gmra.mxu0 %v76
    %v139 = vpop.f32.mrf.mxu0
    %v140 = vadd.f32 0.0, %v139
    %141 = vmatmul.f32.gmra.mxu0 %v77
    %v142 = vpop.f32.mrf.mxu0
    %v143 = vadd.f32 0.0, %v142
    %144 = vmatmul.f32.gmra.mxu0 %v78
    %v145 = vpop.f32.mrf.mxu0
    %v146 = vadd.f32 0.0, %v145
    %147 = vmatmul.f32.gmra.mxu0 %v79
    %v148 = vpop.f32.mrf.mxu0
    %v149 = vadd.f32 0.0, %v148
    %150 = vmatmul.f32.gmra.mxu0 %v80
    %v151 = vpop.f32.mrf.mxu0
    %v152 = vadd.f32 0.0, %v151
    %153 = vmatmul.f32.gmra.mxu0 %v81
    %v154 = vpop.f32.mrf.mxu0
    %v155 = vadd.f32 0.0, %v154
    %156 = vmatmul.f32.gmra.mxu0 %v82
    %v157 = vpop.f32.mrf.mxu0
    %v158 = vadd.f32 0.0, %v157
    %159 = vmatmul.f32.gmra.mxu0 %v83
    %v160 = vpop.f32.mrf.mxu0
    %v161 = vadd.f32 0.0, %v160
    %162 = vmatmul.f32.gmra.mxu0 %v84
    %v163 = vpop.f32.mrf.mxu0
    %v164 = vadd.f32 0.0, %v163
    %165 = vdwg.mxu0
    %v166 = vadd.f32 %v37, %v119
    %v167 = vadd.f32 %v38, %v122
    %v168 = vadd.f32 %v39, %v125
    %v169 = vadd.f32 %v40, %v128
    %v170 = vadd.f32 %v41, %v131
    %v171 = vadd.f32 %v42, %v134
    %v172 = vadd.f32 %v43, %v137
    %v173 = vadd.f32 %v44, %v140
    %v174 = vadd.f32 %v45, %v143
    %v175 = vadd.f32 %v46, %v146
    %v176 = vadd.f32 %v47, %v149
    %v177 = vadd.f32 %v48, %v152
    %v178 = vadd.f32 %v49, %v155
    %v179 = vadd.f32 %v50, %v158
    %v180 = vadd.f32 %v51, %v161
    %v181 = vadd.f32 %v52, %v164
    %182 = vst [vmem:[#allocation2] sm:$0xff] %v166
    %183 = vst [vmem:[#allocation2 + $0x8] sm:$0xff] %v167
    %184 = vst [vmem:[#allocation2 + $0x10] sm:$0xff] %v168
    %185 = vst [vmem:[#allocation2 + $0x18] sm:$0xff] %v169
    %186 = vst [vmem:[#allocation2 + $0x20] sm:$0xff] %v170
    %187 = vst [vmem:[#allocation2 + $0x28] sm:$0xff] %v171
    %188 = vst [vmem:[#allocation2 + $0x30] sm:$0xff] %v172
    %189 = vst [vmem:[#allocation2 + $0x38] sm:$0xff] %v173
    %190 = vst [vmem:[#allocation2 + $0x40] sm:$0xff] %v174
    %191 = vst [vmem:[#allocation2 + $0x48] sm:$0xff] %v175
    %192 = vst [vmem:[#allocation2 + $0x50] sm:$0xff] %v176
    %193 = vst [vmem:[#allocation2 + $0x58] sm:$0xff] %v177
    %194 = vst [vmem:[#allocation2 + $0x60] sm:$0xff] %v178
    %195 = vst [vmem:[#allocation2 + $0x68] sm:$0xff] %v179
    %196 = vst [vmem:[#allocation2 + $0x70] sm:$0xff] %v180
    %197 = vst [vmem:[#allocation2 + $0x78] sm:$0xff] %v181
    // Predicated region
    $region18: #{hgcn_gg_prefer_forward.7} parent=1 // pred_check
      %p198 = pneg %p17
    $region19: #{hgcn_gg_prefer_forward.7} parent=1 // pred_check_branch
      %200 = sbr.rel (%p198) target = $region21
    $region20: #{hgcn_gg_prefer_forward.7} parent=1 // pred_region
      %v201 = vld [vmem:[#allocation2] sm:$0xff]
      %v202 = vld [vmem:[#allocation2 + $0x8] sm:$0xff]
      %v203 = vld [vmem:[#allocation2 + $0x10] sm:$0xff]
      %v204 = vld [vmem:[#allocation2 + $0x18] sm:$0xff]
      %v205 = vld [vmem:[#allocation2 + $0x20] sm:$0xff]
      %v206 = vld [vmem:[#allocation2 + $0x28] sm:$0xff]
      %v207 = vld [vmem:[#allocation2 + $0x30] sm:$0xff]
      %v208 = vld [vmem:[#allocation2 + $0x38] sm:$0xff]
      %v209 = vld [vmem:[#allocation2 + $0x40] sm:$0xff]
      %v210 = vld [vmem:[#allocation2 + $0x48] sm:$0xff]
      %v211 = vld [vmem:[#allocation2 + $0x50] sm:$0xff]
      %v212 = vld [vmem:[#allocation2 + $0x58] sm:$0xff]
      %v213 = vld [vmem:[#allocation2 + $0x60] sm:$0xff]
      %v214 = vld [vmem:[#allocation2 + $0x68] sm:$0xff]
      %v215 = vld [vmem:[#allocation2 + $0x70] sm:$0xff]
      %v216 = vld [vmem:[#allocation2 + $0x78] sm:$0xff]
      %217 = vst [vmem:[#allocation3] sm:$0xff] %v201
      %218 = vst [vmem:[#allocation3 + $0x8] sm:$0xff] %v202
      %219 = vst [vmem:[#allocation3 + $0x10] sm:$0xff] %v203
      %220 = vst [vmem:[#allocation3 + $0x18] sm:$0xff] %v204
      %221 = vst [vmem:[#allocation3 + $0x20] sm:$0xff] %v205
      %222 = vst [vmem:[#allocation3 + $0x28] sm:$0xff] %v206
      %223 = vst [vmem:[#allocation3 + $0x30] sm:$0xff] %v207
      %224 = vst [vmem:[#allocation3 + $0x38] sm:$0xff] %v208
      %225 = vst [vmem:[#allocation3 + $0x40] sm:$0xff] %v209
      %226 = vst [vmem:[#allocation3 + $0x48] sm:$0xff] %v210
      %227 = vst [vmem:[#allocation3 + $0x50] sm:$0xff] %v211
      %228 = vst [vmem:[#allocation3 + $0x58] sm:$0xff] %v212
      %229 = vst [vmem:[#allocation3 + $0x60] sm:$0xff] %v213
      %230 = vst [vmem:[#allocation3 + $0x68] sm:$0xff] %v214
      %231 = vst [vmem:[#allocation3 + $0x70] sm:$0xff] %v215
      %232 = vst [vmem:[#allocation3 + $0x78] sm:$0xff] %v216
      %v233 = vld [vmem:[%s2] sm:$0xff]
      %v234 = vld [vmem:[%s2 + $0x8] sm:$0xff]
      %v235 = vld [vmem:[%s2 + $0x10] sm:$0xff]
      %v236 = vld [vmem:[%s2 + $0x18] sm:$0xff]
      %v237 = vld [vmem:[%s2 + $0x20] sm:$0xff]
      %v238 = vld [vmem:[%s2 + $0x28] sm:$0xff]
      %v239 = vld [vmem:[%s2 + $0x30] sm:$0xff]
      %v240 = vld [vmem:[%s2 + $0x38] sm:$0xff]
      %v241 = vld [vmem:[%s2 + $0x40] sm:$0xff]
      %v242 = vld [vmem:[%s2 + $0x48] sm:$0xff]
      %v243 = vld [vmem:[%s2 + $0x50] sm:$0xff]
      %v244 = vld [vmem:[%s2 + $0x58] sm:$0xff]
      %v245 = vld [vmem:[%s2 + $0x60] sm:$0xff]
      %v246 = vld [vmem:[%s2 + $0x68] sm:$0xff]
      %v247 = vld [vmem:[%s2 + $0x70] sm:$0xff]
      %v248 = vld [vmem:[%s2 + $0x78] sm:$0xff]
      %v249 = vadd.f32 %v233, %v201
      %v250 = vadd.f32 %v234, %v202
      %v251 = vadd.f32 %v235, %v203
      %v252 = vadd.f32 %v236, %v204
      %v253 = vadd.f32 %v237, %v205
      %v254 = vadd.f32 %v238, %v206
      %v255 = vadd.f32 %v239, %v207
      %v256 = vadd.f32 %v240, %v208
      %v257 = vadd.f32 %v241, %v209
      %v258 = vadd.f32 %v242, %v210
      %v259 = vadd.f32 %v243, %v211
      %v260 = vadd.f32 %v244, %v212
      %v261 = vadd.f32 %v245, %v213
      %v262 = vadd.f32 %v246, %v214
      %v263 = vadd.f32 %v247, %v215
      %v264 = vadd.f32 %v248, %v216
      %265 = vst [vmem:[%s4] sm:$0xff] %v249
      %266 = vst [vmem:[%s4 + $0x8] sm:$0xff] %v250
      %267 = vst [vmem:[%s4 + $0x10] sm:$0xff] %v251
      %268 = vst [vmem:[%s4 + $0x18] sm:$0xff] %v252
      %269 = vst [vmem:[%s4 + $0x20] sm:$0xff] %v253
      %270 = vst [vmem:[%s4 + $0x28] sm:$0xff] %v254
      %271 = vst [vmem:[%s4 + $0x30] sm:$0xff] %v255
      %272 = vst [vmem:[%s4 + $0x38] sm:$0xff] %v256
      %273 = vst [vmem:[%s4 + $0x40] sm:$0xff] %v257
      %274 = vst [vmem:[%s4 + $0x48] sm:$0xff] %v258
      %275 = vst [vmem:[%s4 + $0x50] sm:$0xff] %v259
      %276 = vst [vmem:[%s4 + $0x58] sm:$0xff] %v260
      %277 = vst [vmem:[%s4 + $0x60] sm:$0xff] %v261
      %278 = vst [vmem:[%s4 + $0x68] sm:$0xff] %v262
      %279 = vst [vmem:[%s4 + $0x70] sm:$0xff] %v263
      %280 = vst [vmem:[%s4 + $0x78] sm:$0xff] %v264
    $region21: #{hgcn_gg_prefer_forward.7} parent=1 // pred_fallthru
      _
    // Predicated region
    $region22: #{hgcn_gg_prefer_forward.7} parent=1 // pred_check
      _
    $region23: #{hgcn_gg_prefer_forward.7} parent=1 // pred_check_branch
      %282 = sbr.rel (0) target = $region25
    $region24: #{hgcn_gg_prefer_forward.7} parent=1 // pred_region
      %284 = vsyncadd [#allocation4], 0
      %s285 = sshll.u32 [#allocation3], 4
      %s286 = int_to_ptr.vmem [resolvable:$true] %s285
      %s287 = sshll.u32 %s3, 4
      %s288 = int_to_ptr.hbm [resolvable:$true] %s287
      %293 = dma.vmem_to_hbm [thread:$0]  %s286, 2048, %s288, [#allocation4], 128, 128, 8
    $region25: #{hgcn_gg_prefer_forward.7} parent=1 // pred_fallthru
      _
    // Predicated region
    $region26: #{hgcn_gg_prefer_forward.7} parent=1 // pred_check
      _
    $region27: #{hgcn_gg_prefer_forward.7} parent=1 // pred_check_branch
      %295 = sbr.rel (0) target = $region29
    $region28: #{hgcn_gg_prefer_forward.7} parent=1 // pred_region
      _
    $region29: #{hgcn_gg_prefer_forward.7} parent=1 // pred_fallthru
      _
    // Predicated region
    $region30: #{hgcn_gg_prefer_forward.7} parent=1 // pred_check
      _
    $region31: #{hgcn_gg_prefer_forward.7} parent=1 // pred_check_branch
      %297 = sbr.rel (0) target = $region33
    $region32: #{hgcn_gg_prefer_forward.7} parent=1 // pred_region
      %299 = dma.done [#allocation4], 2048
    $region33: #{hgcn_gg_prefer_forward.7} parent=1 // pred_fallthru
      _
    // Predicated region
    $region34: #{hgcn_gg_prefer_forward.7} parent=1 // pred_check
      _
    $region35: #{hgcn_gg_prefer_forward.7} parent=1 // pred_check_branch
      %301 = sbr.rel (0) target = $region37
    $region36: #{hgcn_gg_prefer_forward.7} parent=1 // pred_region
      _
    $region37: #{hgcn_gg_prefer_forward.7} parent=1 // pred_fallthru
      _
    %302 = vsyncpa [#allocation4], 1

// kernel: hgcn_gg_prefer_forward.4
$region0: #{hgcn_gg_prefer_forward.4}
  #allocation0 [shape = 'u32[]', space=smem, size = 0x4, offset = 0x4, fixed_abs, tag = 'smem constant byte address 0x4 - core index']
  #allocation1 [shape = 'u32[72,128]{1,0:T(1,128)}', space=vmem, size = 0x9000, scoped, tag = 'internal scratch']
  #allocation2 [shape = 'f32[128,128]{1,0:T(8,128)}', space=vmem, size = 0x10000, scoped, tag = 'scratch operand']
  %s0 = inlined_call_operand.vmem [shape: bf16[128,128], index: 0, kind: input, shape index: {}]
  %s1 = inlined_call_operand.vmem [shape: f32[128,128], index: 1, kind: input, shape index: {}]
  %s2 = inlined_call_operand.vmem [shape: f32[128,128], index: 2, kind: input, shape index: {}, may-alias: {2,3}]
  %s3 = inlined_call_operand.vmem [shape: f32[128,128], index: 3, kind: input, shape index: {}, may-alias: {2,3}]
  %s4 = inlined_call_operand.vmem [shape: f32[128,128], index: 4, kind: input, shape index: {}]
  %s5 = inlined_call_operand.vmem [shape: f32[128,128], index: 5, kind: input, shape index: {}]
  %s6 = inlined_call_operand.vmem [shape: f32[1,128], index: 6, kind: input, shape index: {}]
  %s7 = inlined_call_operand.vmem [shape: f32[128,128], index: 7, kind: output, shape index: {0}]
  %s8 = inlined_call_operand.vmem [shape: f32[128,128], index: 8, kind: output, shape index: {1}]
  %9 = xla_tuple %s7, %s8
  %s10 = sld [smem:[#allocation0]]
  $region54: #{hgcn_gg_prefer_forward.4} parent=0
    _
  %s12 = ssub.s32 1, %s10
  %s13 = scalar_select 0, %s12, %s10
  // Predicated region
  $region2: #{hgcn_gg_prefer_forward.4} parent=0 // pred_check
    _
  $region3: #{hgcn_gg_prefer_forward.4} parent=0 // pred_check_branch
    %15 = sbr.rel (0) target = $region5
  $region4: #{hgcn_gg_prefer_forward.4} parent=0 // pred_region
    _
  $region5: #{hgcn_gg_prefer_forward.4} parent=0 // pred_fallthru
    _
  // Predicated region
  $region6: #{hgcn_gg_prefer_forward.4} parent=0 // pred_check
    _
  $region7: #{hgcn_gg_prefer_forward.4} parent=0 // pred_check_branch
    %17 = sbr.rel (0) target = $region9
  $region8: #{hgcn_gg_prefer_forward.4} parent=0 // pred_region
    _
  $region9: #{hgcn_gg_prefer_forward.4} parent=0 // pred_fallthru
    _
  // Predicated region
  $region10: #{hgcn_gg_prefer_forward.4} parent=0 // pred_check
    _
  $region11: #{hgcn_gg_prefer_forward.4} parent=0 // pred_check_branch
    %19 = sbr.rel (0) target = $region13
  $region12: #{hgcn_gg_prefer_forward.4} parent=0 // pred_region
    _
  $region13: #{hgcn_gg_prefer_forward.4} parent=0 // pred_fallthru
    _
  // Predicated region
  $region14: #{hgcn_gg_prefer_forward.4} parent=0 // pred_check
    _
  $region15: #{hgcn_gg_prefer_forward.4} parent=0 // pred_check_branch
    %21 = sbr.rel (0) target = $region17
  $region16: #{hgcn_gg_prefer_forward.4} parent=0 // pred_region
    _
  $region17: #{hgcn_gg_prefer_forward.4} parent=0 // pred_fallthru
    _
  // Predicated region
  $region18: #{hgcn_gg_prefer_forward.4} parent=0 // pred_check
    _
  $region19: #{hgcn_gg_prefer_forward.4} parent=0 // pred_check_branch
    %23 = sbr.rel (0) target = $region21
  $region20: #{hgcn_gg_prefer_forward.4} parent=0 // pred_region
    _
  $region21: #{hgcn_gg_prefer_forward.4} parent=0 // pred_fallthru
    _
  // Predicated region
  $region22: #{hgcn_gg_prefer_forward.4} parent=0 // pred_check
    _
  $region23: #{hgcn_gg_prefer_forward.4} parent=0 // pred_check_branch
    %25 = sbr.rel (0) target = $region25
  $region24: #{hgcn_gg_prefer_forward.4} parent=0 // pred_region
    _
  $region25: #{hgcn_gg_prefer_forward.4} parent=0 // pred_fallthru
    _
  // Predicated region
  $region26: #{hgcn_gg_prefer_forward.4} parent=0 // pred_check
    _
  $region27: #{hgcn_gg_prefer_forward.4} parent=0 // pred_check_branch
    %27 = sbr.rel (0) target = $region29
  $region28: #{hgcn_gg_prefer_forward.4} parent=0 // pred_region
    _
  $region29: #{hgcn_gg_prefer_forward.4} parent=0 // pred_fallthru
    _
  %p28 = scmp.eq.s32.totalorder 0, 0
  // Predicated region
  $region30: #{hgcn_gg_prefer_forward.4} parent=0 // pred_check
    %p29 = pneg %p28
  $region31: #{hgcn_gg_prefer_forward.4} parent=0 // pred_check_branch
    %31 = sbr.rel (%p29) target = $region33
  $region32: #{hgcn_gg_prefer_forward.4} parent=0 // pred_region
    %32 = vst [vmem:[#allocation2] sm:$0xff] 0.0
    %33 = vst [vmem:[#allocation2 + $0x8] sm:$0xff] 0.0
    %34 = vst [vmem:[#allocation2 + $0x10] sm:$0xff] 0.0
    %35 = vst [vmem:[#allocation2 + $0x18] sm:$0xff] 0.0
    %36 = vst [vmem:[#allocation2 + $0x20] sm:$0xff] 0.0
    %37 = vst [vmem:[#allocation2 + $0x28] sm:$0xff] 0.0
    %38 = vst [vmem:[#allocation2 + $0x30] sm:$0xff] 0.0
    %39 = vst [vmem:[#allocation2 + $0x38] sm:$0xff] 0.0
    %40 = vst [vmem:[#allocation2 + $0x40] sm:$0xff] 0.0
    %41 = vst [vmem:[#allocation2 + $0x48] sm:$0xff] 0.0
    %42 = vst [vmem:[#allocation2 + $0x50] sm:$0xff] 0.0
    %43 = vst [vmem:[#allocation2 + $0x58] sm:$0xff] 0.0
    %44 = vst [vmem:[#allocation2 + $0x60] sm:$0xff] 0.0
    %45 = vst [vmem:[#allocation2 + $0x68] sm:$0xff] 0.0
    %46 = vst [vmem:[#allocation2 + $0x70] sm:$0xff] 0.0
    %47 = vst [vmem:[#allocation2 + $0x78] sm:$0xff] 0.0
  $region33: #{hgcn_gg_prefer_forward.4} parent=0 // pred_fallthru
    _
  %v48 = vld [vmem:[#allocation2] sm:$0xff]
  %v49 = vld [vmem:[#allocation2 + $0x8] sm:$0xff]
  %v50 = vld [vmem:[#allocation2 + $0x10] sm:$0xff]
  %v51 = vld [vmem:[#allocation2 + $0x18] sm:$0xff]
  %v52 = vld [vmem:[#allocation2 + $0x20] sm:$0xff]
  %v53 = vld [vmem:[#allocation2 + $0x28] sm:$0xff]
  %v54 = vld [vmem:[#allocation2 + $0x30] sm:$0xff]
  %v55 = vld [vmem:[#allocation2 + $0x38] sm:$0xff]
  %v56 = vld [vmem:[#allocation2 + $0x40] sm:$0xff]
  %v57 = vld [vmem:[#allocation2 + $0x48] sm:$0xff]
  %v58 = vld [vmem:[#allocation2 + $0x50] sm:$0xff]
  %v59 = vld [vmem:[#allocation2 + $0x58] sm:$0xff]
  %v60 = vld [vmem:[#allocation2 + $0x60] sm:$0xff]
  %v61 = vld [vmem:[#allocation2 + $0x68] sm:$0xff]
  %v62 = vld [vmem:[#allocation2 + $0x70] sm:$0xff]
  %v63 = vld [vmem:[#allocation2 + $0x78] sm:$0xff]
  %v64 = vld [vmem:[%s0] sm:$0xf]
  %v65 = vld [vmem:[%s0 + $0x4] sm:$0xf]
  %v66 = vld [vmem:[%s0 + $0x8] sm:$0xf]
  %v67 = vld [vmem:[%s0 + $0xc] sm:$0xf]
  %v68 = vld [vmem:[%s0 + $0x10] sm:$0xf]
  %v69 = vld [vmem:[%s0 + $0x14] sm:$0xf]
  %v70 = vld [vmem:[%s0 + $0x18] sm:$0xf]
  %v71 = vld [vmem:[%s0 + $0x1c] sm:$0xf]
  %v72 = vld [vmem:[%s0 + $0x20] sm:$0xf]
  %v73 = vld [vmem:[%s0 + $0x24] sm:$0xf]
  %v74 = vld [vmem:[%s0 + $0x28] sm:$0xf]
  %v75 = vld [vmem:[%s0 + $0x2c] sm:$0xf]
  %v76 = vld [vmem:[%s0 + $0x30] sm:$0xf]
  %v77 = vld [vmem:[%s0 + $0x34] sm:$0xf]
  %v78 = vld [vmem:[%s0 + $0x38] sm:$0xf]
  %v79 = vld [vmem:[%s0 + $0x3c] sm:$0xf]
  %v80 = vunpack.c.l.bf16 %v64
  %v81 = vunpack.c.l.bf16 %v65
  %v82 = vunpack.c.l.bf16 %v66
  %v83 = vunpack.c.l.bf16 %v67
  %v84 = vunpack.c.l.bf16 %v68
  %v85 = vunpack.c.l.bf16 %v69
  %v86 = vunpack.c.l.bf16 %v70
  %v87 = vunpack.c.l.bf16 %v71
  %v88 = vunpack.c.l.bf16 %v72
  %v89 = vunpack.c.l.bf16 %v73
  %v90 = vunpack.c.l.bf16 %v74
  %v91 = vunpack.c.l.bf16 %v75
  %v92 = vunpack.c.l.bf16 %v76
  %v93 = vunpack.c.l.bf16 %v77
  %v94 = vunpack.c.l.bf16 %v78
  %v95 = vunpack.c.l.bf16 %v79
  %v96 = vld [vmem:[%s1] sm:$0xff]
  %v97 = vld [vmem:[%s1 + $0x8] sm:$0xff]
  %v98 = vld [vmem:[%s1 + $0x10] sm:$0xff]
  %v99 = vld [vmem:[%s1 + $0x18] sm:$0xff]
  %v100 = vld [vmem:[%s1 + $0x20] sm:$0xff]
  %v101 = vld [vmem:[%s1 + $0x28] sm:$0xff]
  %v102 = vld [vmem:[%s1 + $0x30] sm:$0xff]
  %v103 = vld [vmem:[%s1 + $0x38] sm:$0xff]
  %v104 = vld [vmem:[%s1 + $0x40] sm:$0xff]
  %v105 = vld [vmem:[%s1 + $0x48] sm:$0xff]
  %v106 = vld [vmem:[%s1 + $0x50] sm:$0xff]
  %v107 = vld [vmem:[%s1 + $0x58] sm:$0xff]
  %v108 = vld [vmem:[%s1 + $0x60] sm:$0xff]
  %v109 = vld [vmem:[%s1 + $0x68] sm:$0xff]
  %v110 = vld [vmem:[%s1 + $0x70] sm:$0xff]
  %v111 = vld [vmem:[%s1 + $0x78] sm:$0xff]
  %112 = vmatpush.msra.mxu0 %v111
  %113 = vmatpush.msra.mxu0 %v110
  %114 = vmatpush.msra.mxu0 %v109
  %115 = vmatpush.msra.mxu0 %v108
  %116 = vmatpush.msra.mxu0 %v107
  %117 = vmatpush.msra.mxu0 %v106
  %118 = vmatpush.msra.mxu0 %v105
  %119 = vmatpush.msra.mxu0 %v104
  %120 = vmatpush.msra.mxu0 %v103
  %121 = vmatpush.msra.mxu0 %v102
  %122 = vmatpush.msra.mxu0 %v101
  %123 = vmatpush.msra.mxu0 %v100
  %124 = vmatpush.msra.mxu0 %v99
  %125 = vmatpush.msra.mxu0 %v98
  %126 = vmatpush.msra.mxu0 %v97
  %127 = vmatpush.msra.mxu0 %v96
  %128 = vmatmul.f32.gmra.mxu0 %v80
  %v129 = vpop.f32.mrf.mxu0
  %v130 = vadd.f32 0.0, %v129
  %131 = vmatmul.f32.gmra.mxu0 %v81
  %v132 = vpop.f32.mrf.mxu0
  %v133 = vadd.f32 0.0, %v132
  %134 = vmatmul.f32.gmra.mxu0 %v82
  %v135 = vpop.f32.mrf.mxu0
  %v136 = vadd.f32 0.0, %v135
  %137 = vmatmul.f32.gmra.mxu0 %v83
  %v138 = vpop.f32.mrf.mxu0
  %v139 = vadd.f32 0.0, %v138
  %140 = vmatmul.f32.gmra.mxu0 %v84
  %v141 = vpop.f32.mrf.mxu0
  %v142 = vadd.f32 0.0, %v141
  %143 = vmatmul.f32.gmra.mxu0 %v85
  %v144 = vpop.f32.mrf.mxu0
  %v145 = vadd.f32 0.0, %v144
  %146 = vmatmul.f32.gmra.mxu0 %v86
  %v147 = vpop.f32.mrf.mxu0
  %v148 = vadd.f32 0.0, %v147
  %149 = vmatmul.f32.gmra.mxu0 %v87
  %v150 = vpop.f32.mrf.mxu0
  %v151 = vadd.f32 0.0, %v150
  %152 = vmatmul.f32.gmra.mxu0 %v88
  %v153 = vpop.f32.mrf.mxu0
  %v154 = vadd.f32 0.0, %v153
  %155 = vmatmul.f32.gmra.mxu0 %v89
  %v156 = vpop.f32.mrf.mxu0
  %v157 = vadd.f32 0.0, %v156
  %158 = vmatmul.f32.gmra.mxu0 %v90
  %v159 = vpop.f32.mrf.mxu0
  %v160 = vadd.f32 0.0, %v159
  %161 = vmatmul.f32.gmra.mxu0 %v91
  %v162 = vpop.f32.mrf.mxu0
  %v163 = vadd.f32 0.0, %v162
  %164 = vmatmul.f32.gmra.mxu0 %v92
  %v165 = vpop.f32.mrf.mxu0
  %v166 = vadd.f32 0.0, %v165
  %167 = vmatmul.f32.gmra.mxu0 %v93
  %v168 = vpop.f32.mrf.mxu0
  %v169 = vadd.f32 0.0, %v168
  %170 = vmatmul.f32.gmra.mxu0 %v94
  %v171 = vpop.f32.mrf.mxu0
  %v172 = vadd.f32 0.0, %v171
  %173 = vmatmul.f32.gmra.mxu0 %v95
  %v174 = vpop.f32.mrf.mxu0
  %v175 = vadd.f32 0.0, %v174
  %176 = vdwg.mxu0
  %v177 = vadd.f32 %v48, %v130
  %v178 = vadd.f32 %v49, %v133
  %v179 = vadd.f32 %v50, %v136
  %v180 = vadd.f32 %v51, %v139
  %v181 = vadd.f32 %v52, %v142
  %v182 = vadd.f32 %v53, %v145
  %v183 = vadd.f32 %v54, %v148
  %v184 = vadd.f32 %v55, %v151
  %v185 = vadd.f32 %v56, %v154
  %v186 = vadd.f32 %v57, %v157
  %v187 = vadd.f32 %v58, %v160
  %v188 = vadd.f32 %v59, %v163
  %v189 = vadd.f32 %v60, %v166
  %v190 = vadd.f32 %v61, %v169
  %v191 = vadd.f32 %v62, %v172
  %v192 = vadd.f32 %v63, %v175
  %193 = vst [vmem:[#allocation2] sm:$0xff] %v177
  %194 = vst [vmem:[#allocation2 + $0x8] sm:$0xff] %v178
  %195 = vst [vmem:[#allocation2 + $0x10] sm:$0xff] %v179
  %196 = vst [vmem:[#allocation2 + $0x18] sm:$0xff] %v180
  %197 = vst [vmem:[#allocation2 + $0x20] sm:$0xff] %v181
  %198 = vst [vmem:[#allocation2 + $0x28] sm:$0xff] %v182
  %199 = vst [vmem:[#allocation2 + $0x30] sm:$0xff] %v183
  %200 = vst [vmem:[#allocation2 + $0x38] sm:$0xff] %v184
  %201 = vst [vmem:[#allocation2 + $0x40] sm:$0xff] %v185
  %202 = vst [vmem:[#allocation2 + $0x48] sm:$0xff] %v186
  %203 = vst [vmem:[#allocation2 + $0x50] sm:$0xff] %v187
  %204 = vst [vmem:[#allocation2 + $0x58] sm:$0xff] %v188
  %205 = vst [vmem:[#allocation2 + $0x60] sm:$0xff] %v189
  %206 = vst [vmem:[#allocation2 + $0x68] sm:$0xff] %v190
  %207 = vst [vmem:[#allocation2 + $0x70] sm:$0xff] %v191
  %208 = vst [vmem:[#allocation2 + $0x78] sm:$0xff] %v192
  // Predicated region
  $region34: #{hgcn_gg_prefer_forward.4} parent=0 // pred_check
    %p209 = pneg %p28
  $region35: #{hgcn_gg_prefer_forward.4} parent=0 // pred_check_branch
    %211 = sbr.rel (%p209) target = $region37
  $region36: #{hgcn_gg_prefer_forward.4} parent=0 // pred_region
    %v212 = vld [vmem:[#allocation2] sm:$0xff]
    %v213 = vld [vmem:[#allocation2 + $0x8] sm:$0xff]
    %v214 = vld [vmem:[#allocation2 + $0x10] sm:$0xff]
    %v215 = vld [vmem:[#allocation2 + $0x18] sm:$0xff]
    %v216 = vld [vmem:[#allocation2 + $0x20] sm:$0xff]
    %v217 = vld [vmem:[#allocation2 + $0x28] sm:$0xff]
    %v218 = vld [vmem:[#allocation2 + $0x30] sm:$0xff]
    %v219 = vld [vmem:[#allocation2 + $0x38] sm:$0xff]
    %v220 = vld [vmem:[#allocation2 + $0x40] sm:$0xff]
    %v221 = vld [vmem:[#allocation2 + $0x48] sm:$0xff]
    %v222 = vld [vmem:[#allocation2 + $0x50] sm:$0xff]
    %v223 = vld [vmem:[#allocation2 + $0x58] sm:$0xff]
    %v224 = vld [vmem:[#allocation2 + $0x60] sm:$0xff]
    %v225 = vld [vmem:[#allocation2 + $0x68] sm:$0xff]
    %v226 = vld [vmem:[#allocation2 + $0x70] sm:$0xff]
    %v227 = vld [vmem:[#allocation2 + $0x78] sm:$0xff]
    %v228 = vld [vmem:[%s2] sm:$0xff]
    %v229 = vld [vmem:[%s2 + $0x8] sm:$0xff]
    %v230 = vld [vmem:[%s2 + $0x10] sm:$0xff]
    %v231 = vld [vmem:[%s2 + $0x18] sm:$0xff]
    %v232 = vld [vmem:[%s2 + $0x20] sm:$0xff]
    %v233 = vld [vmem:[%s2 + $0x28] sm:$0xff]
    %v234 = vld [vmem:[%s2 + $0x30] sm:$0xff]
    %v235 = vld [vmem:[%s2 + $0x38] sm:$0xff]
    %v236 = vld [vmem:[%s2 + $0x40] sm:$0xff]
    %v237 = vld [vmem:[%s2 + $0x48] sm:$0xff]
    %v238 = vld [vmem:[%s2 + $0x50] sm:$0xff]
    %v239 = vld [vmem:[%s2 + $0x58] sm:$0xff]
    %v240 = vld [vmem:[%s2 + $0x60] sm:$0xff]
    %v241 = vld [vmem:[%s2 + $0x68] sm:$0xff]
    %v242 = vld [vmem:[%s2 + $0x70] sm:$0xff]
    %v243 = vld [vmem:[%s2 + $0x78] sm:$0xff]
    %v244 = vmul.f32 %v212, %v228
    %v245 = vmul.f32 %v213, %v229
    %v246 = vmul.f32 %v214, %v230
    %v247 = vmul.f32 %v215, %v231
    %v248 = vmul.f32 %v216, %v232
    %v249 = vmul.f32 %v217, %v233
    %v250 = vmul.f32 %v218, %v234
    %v251 = vmul.f32 %v219, %v235
    %v252 = vmul.f32 %v220, %v236
    %v253 = vmul.f32 %v221, %v237
    %v254 = vmul.f32 %v222, %v238
    %v255 = vmul.f32 %v223, %v239
    %v256 = vmul.f32 %v224, %v240
    %v257 = vmul.f32 %v225, %v241
    %v258 = vmul.f32 %v226, %v242
    %v259 = vmul.f32 %v227, %v243
    %v260 = vld [vmem:[%s4] sm:$0xff]
    %v261 = vld [vmem:[%s4 + $0x8] sm:$0xff]
    %v262 = vld [vmem:[%s4 + $0x10] sm:$0xff]
    %v263 = vld [vmem:[%s4 + $0x18] sm:$0xff]
    %v264 = vld [vmem:[%s4 + $0x20] sm:$0xff]
    %v265 = vld [vmem:[%s4 + $0x28] sm:$0xff]
    %v266 = vld [vmem:[%s4 + $0x30] sm:$0xff]
    %v267 = vld [vmem:[%s4 + $0x38] sm:$0xff]
    %v268 = vld [vmem:[%s4 + $0x40] sm:$0xff]
    %v269 = vld [vmem:[%s4 + $0x48] sm:$0xff]
    %v270 = vld [vmem:[%s4 + $0x50] sm:$0xff]
    %v271 = vld [vmem:[%s4 + $0x58] sm:$0xff]
    %v272 = vld [vmem:[%s4 + $0x60] sm:$0xff]
    %v273 = vld [vmem:[%s4 + $0x68] sm:$0xff]
    %v274 = vld [vmem:[%s4 + $0x70] sm:$0xff]
    %v275 = vld [vmem:[%s4 + $0x78] sm:$0xff]
    %v276 = vld [vmem:[%s5] sm:$0xff]
    %v277 = vld [vmem:[%s5 + $0x8] sm:$0xff]
    %v278 = vld [vmem:[%s5 + $0x10] sm:$0xff]
    %v279 = vld [vmem:[%s5 + $0x18] sm:$0xff]
    %v280 = vld [vmem:[%s5 + $0x20] sm:$0xff]
    %v281 = vld [vmem:[%s5 + $0x28] sm:$0xff]
    %v282 = vld [vmem:[%s5 + $0x30] sm:$0xff]
    %v283 = vld [vmem:[%s5 + $0x38] sm:$0xff]
    %v284 = vld [vmem:[%s5 + $0x40] sm:$0xff]
    %v285 = vld [vmem:[%s5 + $0x48] sm:$0xff]
    %v286 = vld [vmem:[%s5 + $0x50] sm:$0xff]
    %v287 = vld [vmem:[%s5 + $0x58] sm:$0xff]
    %v288 = vld [vmem:[%s5 + $0x60] sm:$0xff]
    %v289 = vld [vmem:[%s5 + $0x68] sm:$0xff]
    %v290 = vld [vmem:[%s5 + $0x70] sm:$0xff]
    %v291 = vld [vmem:[%s5 + $0x78] sm:$0xff]
    %292 = vmatpush.msra.mxu0 %v291
    %293 = vmatpush.msra.mxu0 %v290
    %294 = vmatpush.msra.mxu0 %v289
    %295 = vmatpush.msra.mxu0 %v288
    %296 = vmatpush.msra.mxu0 %v287
    %297 = vmatpush.msra.mxu0 %v286
    %298 = vmatpush.msra.mxu0 %v285
    %299 = vmatpush.msra.mxu0 %v284
    %300 = vmatpush.msra.mxu0 %v283
    %301 = vmatpush.msra.mxu0 %v282
    %302 = vmatpush.msra.mxu0 %v281
    %303 = vmatpush.msra.mxu0 %v280
    %304 = vmatpush.msra.mxu0 %v279
    %305 = vmatpush.msra.mxu0 %v278
    %306 = vmatpush.msra.mxu0 %v277
    %307 = vmatpush.msra.mxu0 %v276
    %308 = vmatmul.f32.gmra.mxu0 %v244
    %v309 = vpop.f32.mrf.mxu0
    %v310 = vadd.f32 0.0, %v309
    %311 = vmatmul.f32.gmra.mxu0 %v245
    %v312 = vpop.f32.mrf.mxu0
    %v313 = vadd.f32 0.0, %v312
    %314 = vmatmul.f32.gmra.mxu0 %v246
    %v315 = vpop.f32.mrf.mxu0
    %v316 = vadd.f32 0.0, %v315
    %317 = vmatmul.f32.gmra.mxu0 %v247
    %v318 = vpop.f32.mrf.mxu0
    %v319 = vadd.f32 0.0, %v318
    %320 = vmatmul.f32.gmra.mxu0 %v248
    %v321 = vpop.f32.mrf.mxu0
    %v322 = vadd.f32 0.0, %v321
    %323 = vmatmul.f32.gmra.mxu0 %v249
    %v324 = vpop.f32.mrf.mxu0
    %v325 = vadd.f32 0.0, %v324
    %326 = vmatmul.f32.gmra.mxu0 %v250
    %v327 = vpop.f32.mrf.mxu0
    %v328 = vadd.f32 0.0, %v327
    %329 = vmatmul.f32.gmra.mxu0 %v251
    %v330 = vpop.f32.mrf.mxu0
    %v331 = vadd.f32 0.0, %v330
    %332 = vmatmul.f32.gmra.mxu0 %v252
    %v333 = vpop.f32.mrf.mxu0
    %v334 = vadd.f32 0.0, %v333
    %335 = vmatmul.f32.gmra.mxu0 %v253
    %v336 = vpop.f32.mrf.mxu0
    %v337 = vadd.f32 0.0, %v336
    %338 = vmatmul.f32.gmra.mxu0 %v254
    %v339 = vpop.f32.mrf.mxu0
    %v340 = vadd.f32 0.0, %v339
    %341 = vmatmul.f32.gmra.mxu0 %v255
    %v342 = vpop.f32.mrf.mxu0
    %v343 = vadd.f32 0.0, %v342
    %344 = vmatmul.f32.gmra.mxu0 %v256
    %v345 = vpop.f32.mrf.mxu0
    %v346 = vadd.f32 0.0, %v345
    %347 = vmatmul.f32.gmra.mxu0 %v257
    %v348 = vpop.f32.mrf.mxu0
    %v349 = vadd.f32 0.0, %v348
    %350 = vmatmul.f32.gmra.mxu0 %v258
    %v351 = vpop.f32.mrf.mxu0
    %v352 = vadd.f32 0.0, %v351
    %353 = vmatmul.f32.gmra.mxu0 %v259
    %v354 = vpop.f32.mrf.mxu0
    %v355 = vadd.f32 0.0, %v354
    %356 = vdwg.mxu0
    %357 = vmatpush.msra.mxu0 %v275
    %358 = vmatpush.msra.mxu0 %v274
    %359 = vmatpush.msra.mxu0 %v273
    %360 = vmatpush.msra.mxu0 %v272
    %361 = vmatpush.msra.mxu0 %v271
    %362 = vmatpush.msra.mxu0 %v270
    %363 = vmatpush.msra.mxu0 %v269
    %364 = vmatpush.msra.mxu0 %v268
    %365 = vmatpush.msra.mxu0 %v267
    %366 = vmatpush.msra.mxu0 %v266
    %367 = vmatpush.msra.mxu0 %v265
    %368 = vmatpush.msra.mxu0 %v264
    %369 = vmatpush.msra.mxu0 %v263
    %370 = vmatpush.msra.mxu0 %v262
    %371 = vmatpush.msra.mxu0 %v261
    %372 = vmatpush.msra.mxu0 %v260
    %373 = vmatmul.f32.gmra.mxu0 %v212
    %v374 = vpop.f32.mrf.mxu0
    %v375 = vadd.f32 %v310, %v374
    %376 = vmatmul.f32.gmra.mxu0 %v213
    %v377 = vpop.f32.mrf.mxu0
    %v378 = vadd.f32 %v313, %v377
    %379 = vmatmul.f32.gmra.mxu0 %v214
    %v380 = vpop.f32.mrf.mxu0
    %v381 = vadd.f32 %v316, %v380
    %382 = vmatmul.f32.gmra.mxu0 %v215
    %v383 = vpop.f32.mrf.mxu0
    %v384 = vadd.f32 %v319, %v383
    %385 = vmatmul.f32.gmra.mxu0 %v216
    %v386 = vpop.f32.mrf.mxu0
    %v387 = vadd.f32 %v322, %v386
    %388 = vmatmul.f32.gmra.mxu0 %v217
    %v389 = vpop.f32.mrf.mxu0
    %v390 = vadd.f32 %v325, %v389
    %391 = vmatmul.f32.gmra.mxu0 %v218
    %v392 = vpop.f32.mrf.mxu0
    %v393 = vadd.f32 %v328, %v392
    %394 = vmatmul.f32.gmra.mxu0 %v219
    %v395 = vpop.f32.mrf.mxu0
    %v396 = vadd.f32 %v331, %v395
    %397 = vmatmul.f32.gmra.mxu0 %v220
    %v398 = vpop.f32.mrf.mxu0
    %v399 = vadd.f32 %v334, %v398
    %400 = vmatmul.f32.gmra.mxu0 %v221
    %v401 = vpop.f32.mrf.mxu0
    %v402 = vadd.f32 %v337, %v401
    %403 = vmatmul.f32.gmra.mxu0 %v222
    %v404 = vpop.f32.mrf.mxu0
    %v405 = vadd.f32 %v340, %v404
    %406 = vmatmul.f32.gmra.mxu0 %v223
    %v407 = vpop.f32.mrf.mxu0
    %v408 = vadd.f32 %v343, %v407
    %409 = vmatmul.f32.gmra.mxu0 %v224
    %v410 = vpop.f32.mrf.mxu0
    %v411 = vadd.f32 %v346, %v410
    %412 = vmatmul.f32.gmra.mxu0 %v225
    %v413 = vpop.f32.mrf.mxu0
    %v414 = vadd.f32 %v349, %v413
    %415 = vmatmul.f32.gmra.mxu0 %v226
    %v416 = vpop.f32.mrf.mxu0
    %v417 = vadd.f32 %v352, %v416
    %418 = vmatmul.f32.gmra.mxu0 %v227
    %v419 = vpop.f32.mrf.mxu0
    %v420 = vadd.f32 %v355, %v419
    %421 = vdwg.mxu0
    %v422 = vld [vmem:[%s6] sm:$0x1]
    %v424 = vperm.slane %v422, 0
    %v426 = vadd.f32 %v375, %v424
    %v427 = vadd.f32 %v378, %v424
    %v428 = vadd.f32 %v381, %v424
    %v429 = vadd.f32 %v384, %v424
    %v430 = vadd.f32 %v387, %v424
    %v431 = vadd.f32 %v390, %v424
    %v432 = vadd.f32 %v393, %v424
    %v433 = vadd.f32 %v396, %v424
    %v434 = vadd.f32 %v399, %v424
    %v435 = vadd.f32 %v402, %v424
    %v436 = vadd.f32 %v405, %v424
    %v437 = vadd.f32 %v408, %v424
    %v438 = vadd.f32 %v411, %v424
    %v439 = vadd.f32 %v414, %v424
    %v440 = vadd.f32 %v417, %v424
    %v441 = vadd.f32 %v420, %v424
    %442 = vst [vmem:[%s7] sm:$0xff] %v426
    %443 = vst [vmem:[%s7 + $0x8] sm:$0xff] %v427
    %444 = vst [vmem:[%s7 + $0x10] sm:$0xff] %v428
    %445 = vst [vmem:[%s7 + $0x18] sm:$0xff] %v429
    %446 = vst [vmem:[%s7 + $0x20] sm:$0xff] %v430
    %447 = vst [vmem:[%s7 + $0x28] sm:$0xff] %v431
    %448 = vst [vmem:[%s7 + $0x30] sm:$0xff] %v432
    %449 = vst [vmem:[%s7 + $0x38] sm:$0xff] %v433
    %450 = vst [vmem:[%s7 + $0x40] sm:$0xff] %v434
    %451 = vst [vmem:[%s7 + $0x48] sm:$0xff] %v435
    %452 = vst [vmem:[%s7 + $0x50] sm:$0xff] %v436
    %453 = vst [vmem:[%s7 + $0x58] sm:$0xff] %v437
    %454 = vst [vmem:[%s7 + $0x60] sm:$0xff] %v438
    %455 = vst [vmem:[%s7 + $0x68] sm:$0xff] %v439
    %456 = vst [vmem:[%s7 + $0x70] sm:$0xff] %v440
    %457 = vst [vmem:[%s7 + $0x78] sm:$0xff] %v441
    %v458 = vld [vmem:[%s3] sm:$0xff]
    %v459 = vld [vmem:[%s3 + $0x8] sm:$0xff]
    %v460 = vld [vmem:[%s3 + $0x10] sm:$0xff]
    %v461 = vld [vmem:[%s3 + $0x18] sm:$0xff]
    %v462 = vld [vmem:[%s3 + $0x20] sm:$0xff]
    %v463 = vld [vmem:[%s3 + $0x28] sm:$0xff]
    %v464 = vld [vmem:[%s3 + $0x30] sm:$0xff]
    %v465 = vld [vmem:[%s3 + $0x38] sm:$0xff]
    %v466 = vld [vmem:[%s3 + $0x40] sm:$0xff]
    %v467 = vld [vmem:[%s3 + $0x48] sm:$0xff]
    %v468 = vld [vmem:[%s3 + $0x50] sm:$0xff]
    %v469 = vld [vmem:[%s3 + $0x58] sm:$0xff]
    %v470 = vld [vmem:[%s3 + $0x60] sm:$0xff]
    %v471 = vld [vmem:[%s3 + $0x68] sm:$0xff]
    %v472 = vld [vmem:[%s3 + $0x70] sm:$0xff]
    %v473 = vld [vmem:[%s3 + $0x78] sm:$0xff]
    %v474 = vadd.f32 %v458, %v426
    %v475 = vadd.f32 %v459, %v427
    %v476 = vadd.f32 %v460, %v428
    %v477 = vadd.f32 %v461, %v429
    %v478 = vadd.f32 %v462, %v430
    %v479 = vadd.f32 %v463, %v431
    %v480 = vadd.f32 %v464, %v432
    %v481 = vadd.f32 %v465, %v433
    %v482 = vadd.f32 %v466, %v434
    %v483 = vadd.f32 %v467, %v435
    %v484 = vadd.f32 %v468, %v436
    %v485 = vadd.f32 %v469, %v437
    %v486 = vadd.f32 %v470, %v438
    %v487 = vadd.f32 %v471, %v439
    %v488 = vadd.f32 %v472, %v440
    %v489 = vadd.f32 %v473, %v441
    %490 = vst [vmem:[%s8] sm:$0xff] %v474
    %491 = vst [vmem:[%s8 + $0x8] sm:$0xff] %v475
    %492 = vst [vmem:[%s8 + $0x10] sm:$0xff] %v476
    %493 = vst [vmem:[%s8 + $0x18] sm:$0xff] %v477
    %494 = vst [vmem:[%s8 + $0x20] sm:$0xff] %v478
    %495 = vst [vmem:[%s8 + $0x28] sm:$0xff] %v479
    %496 = vst [vmem:[%s8 + $0x30] sm:$0xff] %v480
    %497 = vst [vmem:[%s8 + $0x38] sm:$0xff] %v481
    %498 = vst [vmem:[%s8 + $0x40] sm:$0xff] %v482
    %499 = vst [vmem:[%s8 + $0x48] sm:$0xff] %v483
    %500 = vst [vmem:[%s8 + $0x50] sm:$0xff] %v484
    %501 = vst [vmem:[%s8 + $0x58] sm:$0xff] %v485
    %502 = vst [vmem:[%s8 + $0x60] sm:$0xff] %v486
    %503 = vst [vmem:[%s8 + $0x68] sm:$0xff] %v487
    %504 = vst [vmem:[%s8 + $0x70] sm:$0xff] %v488
    %505 = vst [vmem:[%s8 + $0x78] sm:$0xff] %v489
  $region37: #{hgcn_gg_prefer_forward.4} parent=0 // pred_fallthru
    _
  // Predicated region
  $region38: #{hgcn_gg_prefer_forward.4} parent=0 // pred_check
    _
  $region39: #{hgcn_gg_prefer_forward.4} parent=0 // pred_check_branch
    %507 = sbr.rel (0) target = $region41
  $region40: #{hgcn_gg_prefer_forward.4} parent=0 // pred_region
    _
  $region41: #{hgcn_gg_prefer_forward.4} parent=0 // pred_fallthru
    _
  // Predicated region
  $region42: #{hgcn_gg_prefer_forward.4} parent=0 // pred_check
    _
  $region43: #{hgcn_gg_prefer_forward.4} parent=0 // pred_check_branch
    %509 = sbr.rel (0) target = $region45
  $region44: #{hgcn_gg_prefer_forward.4} parent=0 // pred_region
    _
  $region45: #{hgcn_gg_prefer_forward.4} parent=0 // pred_fallthru
    _
  // Predicated region
  $region46: #{hgcn_gg_prefer_forward.4} parent=0 // pred_check
    _
  $region47: #{hgcn_gg_prefer_forward.4} parent=0 // pred_check_branch
    %511 = sbr.rel (0) target = $region49
  $region48: #{hgcn_gg_prefer_forward.4} parent=0 // pred_region
    _
  $region49: #{hgcn_gg_prefer_forward.4} parent=0 // pred_fallthru
    _
  // Predicated region
  $region50: #{hgcn_gg_prefer_forward.4} parent=0 // pred_check
    _
  $region51: #{hgcn_gg_prefer_forward.4} parent=0 // pred_check_branch
    %513 = sbr.rel (0) target = $region53
  $region52: #{hgcn_gg_prefer_forward.4} parent=0 // pred_region
    _
  $region53: #{hgcn_gg_prefer_forward.4} parent=0 // pred_fallthru
    _

</llo_original>
